<compile_context>
chip_gen: v7x
topology: tpu7x:2x2x1
jax: 0.10.0
libtpu: 0.0.40
codegen_flags: <defaults>
</compile_context>

<pallas_src>
import functools

import jax
import jax.numpy as jnp
from jax.experimental import pallas as pl
from jax.experimental.pallas import tpu as pltpu

_LANE = 128


def _round_up(n: int, m: int) -> int:
    return ((n + m - 1) // m) * m


def mlp3_kernel(x_ref, w1_ref, b1_ref, w2_ref, b2_ref, w3_ref, b3_ref, o_ref):
    # bf16 operands feed the MXU; accumulation + bias adds stay in f32 (v5e has
    # no bf16 VALU); re-cast to bf16 only at the next matmul's inputs.
    x = x_ref[...].astype(jnp.bfloat16)
    h1 = jnp.dot(x, w1_ref[...], preferred_element_type=jnp.float32) + b1_ref[...]
    h2 = jnp.dot(h1.astype(jnp.bfloat16), w2_ref[...],
                 preferred_element_type=jnp.float32) + b2_ref[...]
    out = jnp.dot(h2.astype(jnp.bfloat16), w3_ref[...],
                  preferred_element_type=jnp.float32) + b3_ref[...]
    o_ref[...] = out.astype(o_ref.dtype)


def prepare_params(params):
    """One-time (hoisted) padding + bf16 cast of the weights / biases.

    Output feature dims are zero-padded up to multiples of 128 so every matmul
    output (and the kernel's HBM store) is lane-dense; the contraction dim of
    layer 1 (in_dim) is left unpadded (block dim == full array dim is allowed
    and the compiler handles the internal layout pad).  Zero padding keeps the
    valid output slice numerically exact.
    """
    w1, b1 = params["w1"], params["b1"]
    w2, b2 = params["w2"], params["b2"]
    w3, b3 = params["w3"], params["b3"]

    in_dim, h1 = w1.shape
    h2 = w2.shape[1]
    out_dim = w3.shape[1]
    h1_p = _round_up(h1, _LANE)
    h2_p = _round_up(h2, _LANE)
    out_p = _round_up(out_dim, _LANE)

    def pad2(a, rows, cols):
        return jnp.pad(a, ((0, rows - a.shape[0]), (0, cols - a.shape[1])))

    return {
        "w1": pad2(w1, in_dim, h1_p).astype(jnp.bfloat16),
        "b1": pad2(b1, 1, h1_p).astype(jnp.float32),
        "w2": pad2(w2, h1_p, h2_p).astype(jnp.bfloat16),
        "b2": pad2(b2, 1, h2_p).astype(jnp.float32),
        "w3": pad2(w3, h2_p, out_p).astype(jnp.bfloat16),
        "b3": pad2(b3, 1, out_p).astype(jnp.float32),
    }


@functools.partial(jax.jit, static_argnames=("out_dim", "batch_tile", "out_dtype"))
def simple_net_forward(x, prepared, *, out_dim, batch_tile=256,
                       out_dtype=jnp.float32):
    """3-layer MLP forward pass as a single fused Pallas kernel.

    x:        [B, in_dim] float32 (unpadded).
    prepared: output of prepare_params() (padded bf16 weights / f32 biases).
    out_dim:  number of valid output features (static).
    """
    w1, b1 = prepared["w1"], prepared["b1"]
    w2, b2 = prepared["w2"], prepared["b2"]
    w3, b3 = prepared["w3"], prepared["b3"]

    B, in_dim = x.shape
    assert in_dim == w1.shape[0]
    h1_p = w1.shape[1]
    h2_p = w2.shape[1]
    out_p = w3.shape[1]

    # --- batch tiling -------------------------------------------------------
    # Small batches: one grid step (no weight revisits, no megacore weight
    # duplication).  Large batches: `batch_tile`-row tiles, rounded to 16 for
    # bf16 sublane packing.
    b16 = _round_up(B, 16)
    if b16 <= max(batch_tile, 256):
        bm = b16
    else:
        bm = _round_up(min(batch_tile, b16), 16)
    B_p = _round_up(B, bm)
    steps = B_p // bm

    if B_p != B:
        # Only batch rows are padded (cheap, and skipped entirely when B is
        # already a tile multiple).  Padded rows are sliced away below.
        x = jnp.pad(x, ((0, B_p - B), (0, 0)))

    out_itemsize = jax.dtypes.canonicalize_dtype(out_dtype).itemsize
    in_r = _round_up(in_dim, _LANE)  # internal layout rounding of the K dim

    # --- VMEM budget (includes intermediates + recasts + output buffers) ----
    x_bufs = 2 if steps > 1 else 1
    o_bufs = 2 if steps > 1 else 1
    weight_bytes = (in_r * h1_p + h1_p * h2_p + h2_p * out_p) * 2  # bf16, 1-buffered
    block_bytes = (
        x_bufs * bm * in_r * 4                  # x tile (f32, pipelined)
        + bm * in_r * 2                         # in-kernel bf16 copy of x
        + weight_bytes                          # resident weights
        + (h1_p + h2_p + out_p) * 4             # biases (f32)
        + bm * (h1_p + h2_p) * 4                # f32 intermediates h1, h2
        + bm * (h1_p + h2_p) * 2                # bf16 recasts of h1, h2
        + bm * out_p * 4                        # f32 result before cast
        + o_bufs * bm * out_p * out_itemsize    # output tile buffers
    )
    try:
        vmem_cap = int(pltpu.get_tpu_info().vmem_capacity_bytes)
    except Exception:  # pragma: no cover - conservative fallback
        vmem_cap = 64 << 20
    cap = max(vmem_cap - (16 << 20), 32 << 20)  # ~112 MiB v5e/v6e, ~48 MiB v7x
    vmem_limit = int(max(16 << 20, min(block_bytes + (4 << 20), cap)))
    # TODO(synk): on v7x, if weight_bytes approaches ~40-48 MiB (real-model
    # hidden dims), add a K-reduction grid axis for the first matmul
    # (f32 VMEM accumulator + pl.when init/finalize, trailing "arbitrary" axis)
    # instead of relying on the VMEM cap alone.

    # --- grid semantics -----------------------------------------------------
    # Megacore ("parallel") duplicates the resident weights per TensorCore on
    # v7x; only worth it when per-call activation traffic dominates weights.
    act_bytes = B_p * (in_dim * 4 + out_p * out_itemsize)
    if steps == 1:
        semantics = ("arbitrary",)
    elif act_bytes >= 2 * weight_bytes:
        semantics = ("parallel",)
    else:
        semantics = ("arbitrary",)

    flops = 2 * B_p * (in_dim * h1_p + h1_p * h2_p + h2_p * out_p)
    bytes_accessed = (
        B_p * in_dim * 4
        + weight_bytes
        + (h1_p + h2_p + out_p) * 4
        + B_p * out_p * out_itemsize
    )
    cost = pl.CostEstimate(flops=flops, transcendentals=0,
                           bytes_accessed=bytes_accessed)

    # Constant-index blocks: a second pipeline buffer buys no overlap.
    single_buf = pl.Buffered(1)

    out_padded = pl.pallas_call(
        mlp3_kernel,
        out_shape=jax.ShapeDtypeStruct((B_p, out_p), out_dtype),
        grid_spec=pltpu.PrefetchScalarGridSpec(
            num_scalar_prefetch=0,
            grid=(steps,),
            in_specs=[
                pl.BlockSpec((bm, in_dim), lambda i: (i, 0)),          # x tile (f32)
                pl.BlockSpec((in_dim, h1_p), lambda i: (0, 0),
                             pipeline_mode=single_buf),                # w1 (resident)
                pl.BlockSpec((1, h1_p), lambda i: (0, 0),
                             pipeline_mode=single_buf),                # b1
                pl.BlockSpec((h1_p, h2_p), lambda i: (0, 0),
                             pipeline_mode=single_buf),                # w2
                pl.BlockSpec((1, h2_p), lambda i: (0, 0),
                             pipeline_mode=single_buf),                # b2
                pl.BlockSpec((h2_p, out_p), lambda i: (0, 0),
                             pipeline_mode=single_buf),                # w3
                pl.BlockSpec((1, out_p), lambda i: (0, 0),
                             pipeline_mode=single_buf),                # b3
            ],
            out_specs=pl.BlockSpec((bm, out_p), lambda i: (i, 0)),
        ),
        compiler_params=pltpu.CompilerParams(
            dimension_semantics=semantics,
            vmem_limit_bytes=vmem_limit,
        ),
        cost_estimate=cost,
    )(x, w1, b1, w2, b2, w3, b3)

    # Slice away batch/feature padding outside the kernel.
    return out_padded[:B, :out_dim]


def init_params(key, in_dim, n_hidden_1, n_hidden_2, out_dim, dtype=jnp.float32):
    """Deterministic parameter init (PyTorch-Linear-style uniform bounds)."""
    ks = jax.random.split(key, 6)

    def linear(kw, kb, fan_in, fan_out):
        bound = 1.0 / jnp.sqrt(jnp.asarray(fan_in, dtype))
        # stored as [in, out] so the kernel does x @ W
        w = jax.random.uniform(kw, (fan_in, fan_out), dtype, -bound, bound)
        b = jax.random.uniform(kb, (1, fan_out), dtype, -bound, bound)
        return w, b

    w1, b1 = linear(ks[0], ks[1], in_dim, n_hidden_1)
    w2, b2 = linear(ks[2], ks[3], n_hidden_1, n_hidden_2)
    w3, b3 = linear(ks[4], ks[5], n_hidden_2, out_dim)
    return {"w1": w1, "b1": b1, "w2": w2, "b2": b2, "w3": w3, "b3": b3}


if __name__ == "__main__":
    # MNIST-flavoured feature dims at a small batch: in=784, h1=300, h2=100,
    # out=10, batch=32.  Exercises the lane-padding path (h1/h2/out padded to
    # 384/128/128) with a single-step grid and an unpadded K=784.
    B, IN_DIM, H1, H2, OUT = 32, 784, 300, 100, 10

    key = jax.random.PRNGKey(0)
    k_x, k_p = jax.random.split(key)

    x = jax.random.normal(k_x, (B, IN_DIM), dtype=jnp.float32)
    params = init_params(k_p, IN_DIM, H1, H2, OUT)

    # One-time hoisted padding / bf16 cast of the parameters.
    prepared = prepare_params(params)

    y = simple_net_forward(x, prepared, out_dim=OUT)
    y = jax.block_until_ready(y)

    # Pure-JAX reference with the same bf16-matmul / f32-bias numerics.
    w1b = params["w1"].astype(jnp.bfloat16)
    w2b = params["w2"].astype(jnp.bfloat16)
    w3b = params["w3"].astype(jnp.bfloat16)
    h = jnp.dot(x.astype(jnp.bfloat16), w1b,
                preferred_element_type=jnp.float32) + params["b1"]
    h = jnp.dot(h.astype(jnp.bfloat16), w2b,
                preferred_element_type=jnp.float32) + params["b2"]
    ref = jnp.dot(h.astype(jnp.bfloat16), w3b,
                  preferred_element_type=jnp.float32) + params["b3"]

    assert y.shape == (B, OUT)
    assert jnp.allclose(y, ref, atol=2e-2, rtol=2e-2), float(
        jnp.max(jnp.abs(y - ref)))

    print("KERNEL_OK")
</pallas_src>

<mosaic_0001>
module attributes {stable_mosaic.version = 11 : i64} {
  func.func @mlp3_kernel(%arg0: i32, %arg1: memref<32x784xf32, #tpu.memory_space<vmem>>, %arg2: memref<784x384xbf16, #tpu.memory_space<vmem>>, %arg3: memref<1x384xf32, #tpu.memory_space<vmem>>, %arg4: memref<384x128xbf16, #tpu.memory_space<vmem>>, %arg5: memref<1x128xf32, #tpu.memory_space<vmem>>, %arg6: memref<128x128xbf16, #tpu.memory_space<vmem>>, %arg7: memref<1x128xf32, #tpu.memory_space<vmem>>, %arg8: memref<32x128xf32, #tpu.memory_space<vmem>>) attributes {dimension_semantics = [#tpu.dimension_semantics<arbitrary>], iteration_bounds = array<i64: 1>, scalar_prefetch = 0 : i64, scratch_operands = 0 : i64, tpu.core_type = #tpu.core_type<tc>, window_params = [{transform_indices = @transform_0, window_bounds = array<i64: 32, 784>}, {pipeline_mode = #tpu.pipeline_mode<synchronous>, transform_indices = @transform_1, window_bounds = array<i64: 784, 384>}, {pipeline_mode = #tpu.pipeline_mode<synchronous>, transform_indices = @transform_2, window_bounds = array<i64: 1, 384>}, {pipeline_mode = #tpu.pipeline_mode<synchronous>, transform_indices = @transform_3, window_bounds = array<i64: 384, 128>}, {pipeline_mode = #tpu.pipeline_mode<synchronous>, transform_indices = @transform_4, window_bounds = array<i64: 1, 128>}, {pipeline_mode = #tpu.pipeline_mode<synchronous>, transform_indices = @transform_5, window_bounds = array<i64: 128, 128>}, {pipeline_mode = #tpu.pipeline_mode<synchronous>, transform_indices = @transform_6, window_bounds = array<i64: 1, 128>}, {transform_indices = @transform_7, window_bounds = array<i64: 32, 128>}]} {
    %c0 = arith.constant 0 : index
    %c0_0 = arith.constant 0 : index
    %0 = vector.load %arg1[%c0, %c0_0] : memref<32x784xf32, #tpu.memory_space<vmem>>, vector<32x784xf32>
    %1 = arith.truncf %0 : vector<32x784xf32> to vector<32x784xbf16>
    %c0_1 = arith.constant 0 : index
    %c0_2 = arith.constant 0 : index
    %2 = vector.load %arg2[%c0_1, %c0_2] : memref<784x384xbf16, #tpu.memory_space<vmem>>, vector<784x384xbf16>
    %cst = arith.constant dense<0.000000e+00> : vector<32x384xf32>
    %3 = tpu.matmul %1, %2, %cst {dimension_numbers = #tpu.dot_dimension_numbers<[1], [0], [0], [1], [0, 0, 1, 1], [], []>} : vector<32x784xbf16>, vector<784x384xbf16>, vector<32x384xf32> -> vector<32x384xf32>
    %c0_3 = arith.constant 0 : index
    %c0_4 = arith.constant 0 : index
    %4 = vector.load %arg3[%c0_3, %c0_4] : memref<1x384xf32, #tpu.memory_space<vmem>>, vector<1x384xf32>
    %5 = vector.broadcast %4 : vector<1x384xf32> to vector<32x384xf32>
    %6 = arith.addf %3, %5 : vector<32x384xf32>
    %7 = arith.truncf %6 : vector<32x384xf32> to vector<32x384xbf16>
    %c0_5 = arith.constant 0 : index
    %c0_6 = arith.constant 0 : index
    %8 = vector.load %arg4[%c0_5, %c0_6] : memref<384x128xbf16, #tpu.memory_space<vmem>>, vector<384x128xbf16>
    %cst_7 = arith.constant dense<0.000000e+00> : vector<32x128xf32>
    %9 = tpu.matmul %7, %8, %cst_7 {dimension_numbers = #tpu.dot_dimension_numbers<[1], [0], [0], [1], [0, 0, 1, 1], [], []>} : vector<32x384xbf16>, vector<384x128xbf16>, vector<32x128xf32> -> vector<32x128xf32>
    %c0_8 = arith.constant 0 : index
    %c0_9 = arith.constant 0 : index
    %10 = vector.load %arg5[%c0_8, %c0_9] : memref<1x128xf32, #tpu.memory_space<vmem>>, vector<1x128xf32>
    %11 = vector.broadcast %10 : vector<1x128xf32> to vector<32x128xf32>
    %12 = arith.addf %9, %11 : vector<32x128xf32>
    %13 = arith.truncf %12 : vector<32x128xf32> to vector<32x128xbf16>
    %c0_10 = arith.constant 0 : index
    %c0_11 = arith.constant 0 : index
    %14 = vector.load %arg6[%c0_10, %c0_11] : memref<128x128xbf16, #tpu.memory_space<vmem>>, vector<128x128xbf16>
    %cst_12 = arith.constant dense<0.000000e+00> : vector<32x128xf32>
    %15 = tpu.matmul %13, %14, %cst_12 {dimension_numbers = #tpu.dot_dimension_numbers<[1], [0], [0], [1], [0, 0, 1, 1], [], []>} : vector<32x128xbf16>, vector<128x128xbf16>, vector<32x128xf32> -> vector<32x128xf32>
    %c0_13 = arith.constant 0 : index
    %c0_14 = arith.constant 0 : index
    %16 = vector.load %arg7[%c0_13, %c0_14] : memref<1x128xf32, #tpu.memory_space<vmem>>, vector<1x128xf32>
    %17 = vector.broadcast %16 : vector<1x128xf32> to vector<32x128xf32>
    %18 = arith.addf %15, %17 : vector<32x128xf32>
    %c0_15 = arith.constant 0 : index
    %c0_16 = arith.constant 0 : index
    %19 = vector.load %arg8[%c0_15, %c0_16] : memref<32x128xf32, #tpu.memory_space<vmem>>, vector<32x128xf32>
    tpu.vector_store %arg8[%c0_15, %c0_16], %18 {strides = array<i32>} : memref<32x128xf32, #tpu.memory_space<vmem>>, vector<32x128xf32>,
    return
  }
  func.func @transform_0(%arg0: i32) -> (i32, i32) {
    %c0_i32 = arith.constant 0 : i32
    %c0_i32_0 = arith.constant 0 : i32
    return %arg0, %c0_i32 : i32, i32
  }
  func.func @transform_1(%arg0: i32) -> (i32, i32) {
    %c0_i32 = arith.constant 0 : i32
    %c0_i32_0 = arith.constant 0 : i32
    %c0_i32_1 = arith.constant 0 : i32
    return %c0_i32, %c0_i32_0 : i32, i32
  }
  func.func @transform_2(%arg0: i32) -> (i32, i32) {
    %c0_i32 = arith.constant 0 : i32
    %c0_i32_0 = arith.constant 0 : i32
    %c0_i32_1 = arith.constant 0 : i32
    return %c0_i32, %c0_i32_0 : i32, i32
  }
  func.func @transform_3(%arg0: i32) -> (i32, i32) {
    %c0_i32 = arith.constant 0 : i32
    %c0_i32_0 = arith.constant 0 : i32
    %c0_i32_1 = arith.constant 0 : i32
    return %c0_i32, %c0_i32_0 : i32, i32
  }
  func.func @transform_4(%arg0: i32) -> (i32, i32) {
    %c0_i32 = arith.constant 0 : i32
    %c0_i32_0 = arith.constant 0 : i32
    %c0_i32_1 = arith.constant 0 : i32
    return %c0_i32, %c0_i32_0 : i32, i32
  }
  func.func @transform_5(%arg0: i32) -> (i32, i32) {
    %c0_i32 = arith.constant 0 : i32
    %c0_i32_0 = arith.constant 0 : i32
    %c0_i32_1 = arith.constant 0 : i32
    return %c0_i32, %c0_i32_0 : i32, i32
  }
  func.func @transform_6(%arg0: i32) -> (i32, i32) {
    %c0_i32 = arith.constant 0 : i32
    %c0_i32_0 = arith.constant 0 : i32
    %c0_i32_1 = arith.constant 0 : i32
    return %c0_i32, %c0_i32_0 : i32, i32
  }
  func.func @transform_7(%arg0: i32) -> (i32, i32) {
    %c0_i32 = arith.constant 0 : i32
    %c0_i32_0 = arith.constant 0 : i32
    return %arg0, %c0_i32 : i32, i32
  }
}

</mosaic_0001>

<llo_original>
// kernel: simple_net_forward.1
$region0: #{simple_net_forward.1}
  #allocation0 [shape = 'u32[]', space=smem, size = 0x4, offset = 0x4, fixed_abs, tag = 'smem constant byte address 0x4 - core index']
  #allocation1 [shape = 'u32[144,128]{1,0:T(1,128)}', space=vmem, size = 0x12000, scoped, tag = 'internal scratch']
  %s0 = inlined_call_operand.hbm [shape: f32[32,784], index: 0, kind: input, shape index: {}]
  %s1 = inlined_call_operand.hbm [shape: bf16[784,384], index: 1, kind: input, shape index: {}]
  %s2 = inlined_call_operand.vmem [shape: f32[1,384], index: 2, kind: input, shape index: {}]
  %s3 = inlined_call_operand.hbm [shape: bf16[384,128], index: 3, kind: input, shape index: {}]
  %s4 = inlined_call_operand.vmem [shape: f32[1,128], index: 4, kind: input, shape index: {}]
  %s5 = inlined_call_operand.hbm [shape: bf16[128,128], index: 5, kind: input, shape index: {}]
  %s6 = inlined_call_operand.vmem [shape: f32[1,128], index: 6, kind: input, shape index: {}]
  %s7 = inlined_call_operand.vmem [shape: f32[32,128], index: 7, kind: output, shape index: {}]
  %s8 = sld [smem:[#allocation0]]
  $region54: #{simple_net_forward.1} parent=0
    _
  %s10 = ssub.s32 1, %s8
  %s11 = scalar_select 0, %s10, %s8
  $region1: #{simple_net_forward.1} parent=0
    #allocation2 [shape = 'u8[114688]{0}', space=vmem, size = 0x1c000, scoped, tag = 'input window, operand 0, single buffered']
    #allocation3 [shape = 's32[1]{0}', space=sflag, size = 0x4, scoped, tag = 'scoped memory for simple_net_forward.1']
    #allocation4 [shape = 'u8[602112]{0}', space=vmem, size = 0x93000, scoped, tag = 'input window, operand 1, single buffered']
    #allocation5 [shape = 's32[1]{0}', space=sflag, size = 0x4, scoped, tag = 'scoped memory for simple_net_forward.1']
    #allocation6 [shape = 'u8[98304]{0}', space=vmem, size = 0x18000, scoped, tag = 'input window, operand 3, single buffered']
    #allocation7 [shape = 'u8[32768]{0}', space=vmem, size = 0x8000, scoped, tag = 'input window, operand 5, single buffered']
    #allocation8 [shape = 's32[1]{0}', space=sflag, size = 0x4, scoped, tag = 'scoped memory for simple_net_forward.1']
    %12 = vsyncpa [#allocation3], 0
    %13 = vsyncpa [#allocation5], 0
    %14 = vsyncpa [#allocation8], 0
    // Predicated region
    $region2: #{simple_net_forward.1} parent=1 // pred_check
      _
    $region3: #{simple_net_forward.1} parent=1 // pred_check_branch
      %16 = sbr.rel (0) target = $region5
    $region4: #{simple_net_forward.1} parent=1 // pred_region
      %s18 = ssub.s32 3584, 3584
      %19 = vsyncadd [#allocation3], %s18
      %s20 = sshll.u32 [#allocation2], 4
      %s21 = int_to_ptr.vmem [resolvable:$true] %s20
      %26 = dma.hbm_to_vmem [thread:$0]  %s0, 3584, %s21, [#allocation3], 896, 896, 56
    $region5: #{simple_net_forward.1} parent=1 // pred_fallthru
      _
    // Predicated region
    $region6: #{simple_net_forward.1} parent=1 // pred_check
      _
    $region7: #{simple_net_forward.1} parent=1 // pred_check_branch
      %28 = sbr.rel (0) target = $region9
    $region8: #{simple_net_forward.1} parent=1 // pred_region
      %s30 = ssub.s32 18816, 18816
      %31 = vsyncadd [#allocation5], %s30
      %s32 = sshll.u32 [#allocation4], 4
      %s33 = int_to_ptr.vmem [resolvable:$true] %s32
      %38 = dma.hbm_to_vmem [thread:$0]  %s1, 18816, %s33, [#allocation5], 192, 192, 12
    $region9: #{simple_net_forward.1} parent=1 // pred_fallthru
      _
    // Predicated region
    $region10: #{simple_net_forward.1} parent=1 // pred_check
      _
    $region11: #{simple_net_forward.1} parent=1 // pred_check_branch
      %40 = sbr.rel (0) target = $region13
    $region12: #{simple_net_forward.1} parent=1 // pred_region
      _
    $region13: #{simple_net_forward.1} parent=1 // pred_fallthru
      _
    // Predicated region
    $region14: #{simple_net_forward.1} parent=1 // pred_check
      _
    $region15: #{simple_net_forward.1} parent=1 // pred_check_branch
      %42 = sbr.rel (0) target = $region17
    $region16: #{simple_net_forward.1} parent=1 // pred_region
      %s44 = ssub.s32 3072, 3072
      %45 = vsyncadd [#allocation5], %s44
      %s46 = sshll.u32 [#allocation6], 4
      %s47 = int_to_ptr.vmem [resolvable:$true] %s46
      %52 = dma.hbm_to_vmem [thread:$0]  %s3, 3072, %s47, [#allocation5], 64, 64, 4
    $region17: #{simple_net_forward.1} parent=1 // pred_fallthru
      _
    // Predicated region
    $region18: #{simple_net_forward.1} parent=1 // pred_check
      _
    $region19: #{simple_net_forward.1} parent=1 // pred_check_branch
      %54 = sbr.rel (0) target = $region21
    $region20: #{simple_net_forward.1} parent=1 // pred_region
      _
    $region21: #{simple_net_forward.1} parent=1 // pred_fallthru
      _
    // Predicated region
    $region22: #{simple_net_forward.1} parent=1 // pred_check
      _
    $region23: #{simple_net_forward.1} parent=1 // pred_check_branch
      %56 = sbr.rel (0) target = $region25
    $region24: #{simple_net_forward.1} parent=1 // pred_region
      %s58 = ssub.s32 1024, 1024
      %59 = vsyncadd [#allocation8], %s58
      %s60 = sshll.u32 [#allocation7], 4
      %s61 = int_to_ptr.vmem [resolvable:$true] %s60
      %66 = dma.hbm_to_vmem [thread:$0]  %s5, 1024, %s61, [#allocation8], 64, 64, 4
    $region25: #{simple_net_forward.1} parent=1 // pred_fallthru
      _
    // Predicated region
    $region26: #{simple_net_forward.1} parent=1 // pred_check
      _
    $region27: #{simple_net_forward.1} parent=1 // pred_check_branch
      %68 = sbr.rel (0) target = $region29
    $region28: #{simple_net_forward.1} parent=1 // pred_region
      _
    $region29: #{simple_net_forward.1} parent=1 // pred_fallthru
      _
    // Predicated region
    $region30: #{simple_net_forward.1} parent=1 // pred_check
      _
    $region31: #{simple_net_forward.1} parent=1 // pred_check_branch
      %70 = sbr.rel (0) target = $region33
    $region32: #{simple_net_forward.1} parent=1 // pred_region
      %71 = dma.done [#allocation3], 3584
    $region33: #{simple_net_forward.1} parent=1 // pred_fallthru
      _
    // Predicated region
    $region34: #{simple_net_forward.1} parent=1 // pred_check
      _
    $region35: #{simple_net_forward.1} parent=1 // pred_check_branch
      %73 = sbr.rel (0) target = $region37
    $region36: #{simple_net_forward.1} parent=1 // pred_region
      %74 = dma.done [#allocation5], 18816
    $region37: #{simple_net_forward.1} parent=1 // pred_fallthru
      _
    // Predicated region
    $region38: #{simple_net_forward.1} parent=1 // pred_check
      _
    $region39: #{simple_net_forward.1} parent=1 // pred_check_branch
      %76 = sbr.rel (0) target = $region41
    $region40: #{simple_net_forward.1} parent=1 // pred_region
      %77 = dma.done [#allocation5], 3072
    $region41: #{simple_net_forward.1} parent=1 // pred_fallthru
      _
    // Predicated region
    $region42: #{simple_net_forward.1} parent=1 // pred_check
      _
    $region43: #{simple_net_forward.1} parent=1 // pred_check_branch
      %79 = sbr.rel (0) target = $region45
    $region44: #{simple_net_forward.1} parent=1 // pred_region
      %80 = dma.done [#allocation8], 1024
    $region45: #{simple_net_forward.1} parent=1 // pred_fallthru
      _
    %v82 = vld [vmem:[#allocation2] sm:$0xff]
    %v83 = vld [vmem:[#allocation2 + $0x8] sm:$0xff]
    %v84 = vld [vmem:[#allocation2 + $0x10] sm:$0xff]
    %v85 = vld [vmem:[#allocation2 + $0x18] sm:$0xff]
    %v86 = vld [vmem:[#allocation2 + $0x20] sm:$0xff]
    %v87 = vld [vmem:[#allocation2 + $0x28] sm:$0xff]
    %v88 = vld [vmem:[#allocation2 + $0x30] sm:$0xff]
    %v89 = vld [vmem:[#allocation2 + $0x38] sm:$0xff]
    %v90 = vld [vmem:[#allocation2 + $0x40] sm:$0xff]
    %v91 = vld [vmem:[#allocation2 + $0x48] sm:$0xff]
    %v92 = vld [vmem:[#allocation2 + $0x50] sm:$0xff]
    %v93 = vld [vmem:[#allocation2 + $0x58] sm:$0xff]
    %v94 = vld [vmem:[#allocation2 + $0x60] sm:$0xff]
    %v95 = vld [vmem:[#allocation2 + $0x68] sm:$0xff]
    %v96 = vld [vmem:[#allocation2 + $0x70] sm:$0xff]
    %v97 = vld [vmem:[#allocation2 + $0x78] sm:$0xff]
    %v98 = vld [vmem:[#allocation2 + $0x80] sm:$0xff]
    %v99 = vld [vmem:[#allocation2 + $0x88] sm:$0xff]
    %v100 = vld [vmem:[#allocation2 + $0x90] sm:$0xff]
    %v101 = vld [vmem:[#allocation2 + $0x98] sm:$0xff]
    %v102 = vld [vmem:[#allocation2 + $0xa0] sm:$0xff]
    %v103 = vld [vmem:[#allocation2 + $0xa8] sm:$0xff]
    %v104 = vld [vmem:[#allocation2 + $0xb0] sm:$0xff]
    %v105 = vld [vmem:[#allocation2 + $0xb8] sm:$0xff]
    %v106 = vld [vmem:[#allocation2 + $0xc0] sm:$0xff]
    %v107 = vld [vmem:[#allocation2 + $0xc8] sm:$0xff]
    %v108 = vld [vmem:[#allocation2 + $0xd0] sm:$0xff]
    %v109 = vld [vmem:[#allocation2 + $0xd8] sm:$0xff]
    %v110 = vpack.c.bf16 %v89, %v82
    %v111 = vpack.c.bf16 %v90, %v83
    %v112 = vpack.c.bf16 %v91, %v84
    %v113 = vpack.c.bf16 %v92, %v85
    %v114 = vpack.c.bf16 %v93, %v86
    %v115 = vpack.c.bf16 %v94, %v87
    %v116 = vpack.c.bf16 %v95, %v88
    %v117 = vpack.c.bf16 %v103, %v96
    %v118 = vpack.c.bf16 %v104, %v97
    %v119 = vpack.c.bf16 %v105, %v98
    %v120 = vpack.c.bf16 %v106, %v99
    %v121 = vpack.c.bf16 %v107, %v100
    %v122 = vpack.c.bf16 %v108, %v101
    %v123 = vpack.c.bf16 %v109, %v102
    %v124 = vld [vmem:[#allocation4] sm:$0xff]
    %v125 = vld [vmem:[#allocation4 + $0x8] sm:$0xf]
    %v126 = vld [vmem:[#allocation4 + $0xc] sm:$0xff]
    %v127 = vld [vmem:[#allocation4 + $0x14] sm:$0xf]
    %v128 = vld [vmem:[#allocation4 + $0x18] sm:$0xff]
    %v129 = vld [vmem:[#allocation4 + $0x20] sm:$0xf]
    %v130 = vld [vmem:[#allocation4 + $0x24] sm:$0xff]
    %v131 = vld [vmem:[#allocation4 + $0x2c] sm:$0xf]
    %v132 = vld [vmem:[#allocation4 + $0x30] sm:$0xff]
    %v133 = vld [vmem:[#allocation4 + $0x38] sm:$0xf]
    %v134 = vld [vmem:[#allocation4 + $0x3c] sm:$0xff]
    %v135 = vld [vmem:[#allocation4 + $0x44] sm:$0xf]
    %v136 = vld [vmem:[#allocation4 + $0x48] sm:$0xff]
    %v137 = vld [vmem:[#allocation4 + $0x50] sm:$0xf]
    %v138 = vld [vmem:[#allocation4 + $0x54] sm:$0xff]
    %v139 = vld [vmem:[#allocation4 + $0x5c] sm:$0xf]
    %v140 = vld [vmem:[#allocation4 + $0x60] sm:$0xff]
    %v141 = vld [vmem:[#allocation4 + $0x68] sm:$0xf]
    %v142 = vld [vmem:[#allocation4 + $0x6c] sm:$0xff]
    %v143 = vld [vmem:[#allocation4 + $0x74] sm:$0xf]
    %v144 = vld [vmem:[#allocation4 + $0x78] sm:$0xff]
    %v145 = vld [vmem:[#allocation4 + $0x80] sm:$0xf]
    %v146 = vld [vmem:[#allocation4 + $0x84] sm:$0xff]
    %v147 = vld [vmem:[#allocation4 + $0x8c] sm:$0xf]
    %v148 = vld [vmem:[#allocation4 + $0x90] sm:$0xff]
    %v149 = vld [vmem:[#allocation4 + $0x98] sm:$0xf]
    %v150 = vld [vmem:[#allocation4 + $0x9c] sm:$0xff]
    %v151 = vld [vmem:[#allocation4 + $0xa4] sm:$0xf]
    %v152 = vld [vmem:[#allocation4 + $0xa8] sm:$0xff]
    %v153 = vld [vmem:[#allocation4 + $0xb0] sm:$0xf]
    %v154 = vld [vmem:[#allocation4 + $0xb4] sm:$0xff]
    %v155 = vld [vmem:[#allocation4 + $0xbc] sm:$0xf]
    %v156 = vld [vmem:[#allocation4 + $0xc0] sm:$0xff]
    %v157 = vld [vmem:[#allocation4 + $0xc8] sm:$0xf]
    %v158 = vld [vmem:[#allocation4 + $0xcc] sm:$0xff]
    %v159 = vld [vmem:[#allocation4 + $0xd4] sm:$0xf]
    %v160 = vld [vmem:[#allocation4 + $0xd8] sm:$0xff]
    %v161 = vld [vmem:[#allocation4 + $0xe0] sm:$0xf]
    %v162 = vld [vmem:[#allocation4 + $0xe4] sm:$0xff]
    %v163 = vld [vmem:[#allocation4 + $0xec] sm:$0xf]
    %v164 = vld [vmem:[#allocation4 + $0xf0] sm:$0xff]
    %v165 = vld [vmem:[#allocation4 + $0xf8] sm:$0xf]
    %v166 = vld [vmem:[#allocation4 + $0xfc] sm:$0xff]
    %v167 = vld [vmem:[#allocation4 + $0x104] sm:$0xf]
    %v168 = vld [vmem:[#allocation4 + $0x108] sm:$0xff]
    %v169 = vld [vmem:[#allocation4 + $0x110] sm:$0xf]
    %v170 = vld [vmem:[#allocation4 + $0x114] sm:$0xff]
    %v171 = vld [vmem:[#allocation4 + $0x11c] sm:$0xf]
    %v172 = vld [vmem:[#allocation4 + $0x120] sm:$0xff]
    %v173 = vld [vmem:[#allocation4 + $0x128] sm:$0xf]
    %v174 = vld [vmem:[#allocation4 + $0x12c] sm:$0xff]
    %v175 = vld [vmem:[#allocation4 + $0x134] sm:$0xf]
    %v176 = vld [vmem:[#allocation4 + $0x138] sm:$0xff]
    %v177 = vld [vmem:[#allocation4 + $0x140] sm:$0xf]
    %v178 = vld [vmem:[#allocation4 + $0x144] sm:$0xff]
    %v179 = vld [vmem:[#allocation4 + $0x14c] sm:$0xf]
    %v180 = vld [vmem:[#allocation4 + $0x150] sm:$0xff]
    %v181 = vld [vmem:[#allocation4 + $0x158] sm:$0xf]
    %v182 = vld [vmem:[#allocation4 + $0x15c] sm:$0xff]
    %v183 = vld [vmem:[#allocation4 + $0x164] sm:$0xf]
    %v184 = vld [vmem:[#allocation4 + $0x168] sm:$0xff]
    %v185 = vld [vmem:[#allocation4 + $0x170] sm:$0xf]
    %v186 = vld [vmem:[#allocation4 + $0x174] sm:$0xff]
    %v187 = vld [vmem:[#allocation4 + $0x17c] sm:$0xf]
    %v188 = vld [vmem:[#allocation4 + $0x180] sm:$0xff]
    %v189 = vld [vmem:[#allocation4 + $0x188] sm:$0xf]
    %v190 = vld [vmem:[#allocation4 + $0x18c] sm:$0xff]
    %v191 = vld [vmem:[#allocation4 + $0x194] sm:$0xf]
    %v192 = vld [vmem:[#allocation4 + $0x198] sm:$0xff]
    %v193 = vld [vmem:[#allocation4 + $0x1a0] sm:$0xf]
    %v194 = vld [vmem:[#allocation4 + $0x1a4] sm:$0xff]
    %v195 = vld [vmem:[#allocation4 + $0x1ac] sm:$0xf]
    %v196 = vld [vmem:[#allocation4 + $0x1b0] sm:$0xff]
    %v197 = vld [vmem:[#allocation4 + $0x1b8] sm:$0xf]
    %v198 = vld [vmem:[#allocation4 + $0x1bc] sm:$0xff]
    %v199 = vld [vmem:[#allocation4 + $0x1c4] sm:$0xf]
    %v200 = vld [vmem:[#allocation4 + $0x1c8] sm:$0xff]
    %v201 = vld [vmem:[#allocation4 + $0x1d0] sm:$0xf]
    %v202 = vld [vmem:[#allocation4 + $0x1d4] sm:$0xff]
    %v203 = vld [vmem:[#allocation4 + $0x1dc] sm:$0xf]
    %v204 = vld [vmem:[#allocation4 + $0x1e0] sm:$0xff]
    %v205 = vld [vmem:[#allocation4 + $0x1e8] sm:$0xf]
    %v206 = vld [vmem:[#allocation4 + $0x1ec] sm:$0xff]
    %v207 = vld [vmem:[#allocation4 + $0x1f4] sm:$0xf]
    %v208 = vld [vmem:[#allocation4 + $0x1f8] sm:$0xff]
    %v209 = vld [vmem:[#allocation4 + $0x200] sm:$0xf]
    %v210 = vld [vmem:[#allocation4 + $0x204] sm:$0xff]
    %v211 = vld [vmem:[#allocation4 + $0x20c] sm:$0xf]
    %v212 = vld [vmem:[#allocation4 + $0x210] sm:$0xff]
    %v213 = vld [vmem:[#allocation4 + $0x218] sm:$0xf]
    %v214 = vld [vmem:[#allocation4 + $0x21c] sm:$0xff]
    %v215 = vld [vmem:[#allocation4 + $0x224] sm:$0xf]
    %v216 = vld [vmem:[#allocation4 + $0x228] sm:$0xff]
    %v217 = vld [vmem:[#allocation4 + $0x230] sm:$0xf]
    %v218 = vld [vmem:[#allocation4 + $0x234] sm:$0xff]
    %v219 = vld [vmem:[#allocation4 + $0x23c] sm:$0xf]
    %v220 = vld [vmem:[#allocation4 + $0x240] sm:$0xff]
    %v221 = vld [vmem:[#allocation4 + $0x248] sm:$0xf]
    %v222 = vld [vmem:[#allocation4 + $0x24c] sm:$0xff]
    %v223 = vld [vmem:[#allocation4 + $0x254] sm:$0xf]
    %v224 = vld [vmem:[#allocation4 + $0x258] sm:$0xff]
    %v225 = vld [vmem:[#allocation4 + $0x260] sm:$0xf]
    %v226 = vld [vmem:[#allocation4 + $0x264] sm:$0xff]
    %v227 = vld [vmem:[#allocation4 + $0x26c] sm:$0xf]
    %v228 = vld [vmem:[#allocation4 + $0x270] sm:$0xff]
    %v229 = vld [vmem:[#allocation4 + $0x278] sm:$0xf]
    %v230 = vld [vmem:[#allocation4 + $0x27c] sm:$0xff]
    %v231 = vld [vmem:[#allocation4 + $0x284] sm:$0xf]
    %v232 = vld [vmem:[#allocation4 + $0x288] sm:$0xff]
    %v233 = vld [vmem:[#allocation4 + $0x290] sm:$0xf]
    %v234 = vld [vmem:[#allocation4 + $0x294] sm:$0xff]
    %v235 = vld [vmem:[#allocation4 + $0x29c] sm:$0xf]
    %v236 = vld [vmem:[#allocation4 + $0x2a0] sm:$0xff]
    %v237 = vld [vmem:[#allocation4 + $0x2a8] sm:$0xf]
    %v238 = vld [vmem:[#allocation4 + $0x2ac] sm:$0xff]
    %v239 = vld [vmem:[#allocation4 + $0x2b4] sm:$0xf]
    %v240 = vld [vmem:[#allocation4 + $0x2b8] sm:$0xff]
    %v241 = vld [vmem:[#allocation4 + $0x2c0] sm:$0xf]
    %v242 = vld [vmem:[#allocation4 + $0x2c4] sm:$0xff]
    %v243 = vld [vmem:[#allocation4 + $0x2cc] sm:$0xf]
    %v244 = vld [vmem:[#allocation4 + $0x2d0] sm:$0xff]
    %v245 = vld [vmem:[#allocation4 + $0x2d8] sm:$0xf]
    %v246 = vld [vmem:[#allocation4 + $0x2dc] sm:$0xff]
    %v247 = vld [vmem:[#allocation4 + $0x2e4] sm:$0xf]
    %v248 = vld [vmem:[#allocation4 + $0x2e8] sm:$0xff]
    %v249 = vld [vmem:[#allocation4 + $0x2f0] sm:$0xf]
    %v250 = vld [vmem:[#allocation4 + $0x2f4] sm:$0xff]
    %v251 = vld [vmem:[#allocation4 + $0x2fc] sm:$0xf]
    %v252 = vld [vmem:[#allocation4 + $0x300] sm:$0xff]
    %v253 = vld [vmem:[#allocation4 + $0x308] sm:$0xf]
    %v254 = vld [vmem:[#allocation4 + $0x30c] sm:$0xff]
    %v255 = vld [vmem:[#allocation4 + $0x314] sm:$0xf]
    %v256 = vld [vmem:[#allocation4 + $0x318] sm:$0xff]
    %v257 = vld [vmem:[#allocation4 + $0x320] sm:$0xf]
    %v258 = vld [vmem:[#allocation4 + $0x324] sm:$0xff]
    %v259 = vld [vmem:[#allocation4 + $0x32c] sm:$0xf]
    %v260 = vld [vmem:[#allocation4 + $0x330] sm:$0xff]
    %v261 = vld [vmem:[#allocation4 + $0x338] sm:$0xf]
    %v262 = vld [vmem:[#allocation4 + $0x33c] sm:$0xff]
    %v263 = vld [vmem:[#allocation4 + $0x344] sm:$0xf]
    %v264 = vld [vmem:[#allocation4 + $0x348] sm:$0xff]
    %v265 = vld [vmem:[#allocation4 + $0x350] sm:$0xf]
    %v266 = vld [vmem:[#allocation4 + $0x354] sm:$0xff]
    %v267 = vld [vmem:[#allocation4 + $0x35c] sm:$0xf]
    %v268 = vld [vmem:[#allocation4 + $0x360] sm:$0xff]
    %v269 = vld [vmem:[#allocation4 + $0x368] sm:$0xf]
    %v270 = vld [vmem:[#allocation4 + $0x36c] sm:$0xff]
    %v271 = vld [vmem:[#allocation4 + $0x374] sm:$0xf]
    %v272 = vld [vmem:[#allocation4 + $0x378] sm:$0xff]
    %v273 = vld [vmem:[#allocation4 + $0x380] sm:$0xf]
    %v274 = vld [vmem:[#allocation4 + $0x384] sm:$0xff]
    %v275 = vld [vmem:[#allocation4 + $0x38c] sm:$0xf]
    %v276 = vld [vmem:[#allocation4 + $0x390] sm:$0xff]
    %v277 = vld [vmem:[#allocation4 + $0x398] sm:$0xf]
    %v278 = vld [vmem:[#allocation4 + $0x39c] sm:$0xff]
    %v279 = vld [vmem:[#allocation4 + $0x3a4] sm:$0xf]
    %v280 = vld [vmem:[#allocation4 + $0x3a8] sm:$0xff]
    %v281 = vld [vmem:[#allocation4 + $0x3b0] sm:$0xf]
    %v282 = vld [vmem:[#allocation4 + $0x3b4] sm:$0xff]
    %v283 = vld [vmem:[#allocation4 + $0x3bc] sm:$0xf]
    %v284 = vld [vmem:[#allocation4 + $0x3c0] sm:$0xff]
    %v285 = vld [vmem:[#allocation4 + $0x3c8] sm:$0xf]
    %v286 = vld [vmem:[#allocation4 + $0x3cc] sm:$0xff]
    %v287 = vld [vmem:[#allocation4 + $0x3d4] sm:$0xf]
    %v288 = vld [vmem:[#allocation4 + $0x3d8] sm:$0xff]
    %v289 = vld [vmem:[#allocation4 + $0x3e0] sm:$0xf]
    %v290 = vld [vmem:[#allocation4 + $0x3e4] sm:$0xff]
    %v291 = vld [vmem:[#allocation4 + $0x3ec] sm:$0xf]
    %v292 = vld [vmem:[#allocation4 + $0x3f0] sm:$0xff]
    %v293 = vld [vmem:[#allocation4 + $0x3f8] sm:$0xf]
    %v294 = vld [vmem:[#allocation4 + $0x3fc] sm:$0xff]
    %v295 = vld [vmem:[#allocation4 + $0x404] sm:$0xf]
    %v296 = vld [vmem:[#allocation4 + $0x408] sm:$0xff]
    %v297 = vld [vmem:[#allocation4 + $0x410] sm:$0xf]
    %v298 = vld [vmem:[#allocation4 + $0x414] sm:$0xff]
    %v299 = vld [vmem:[#allocation4 + $0x41c] sm:$0xf]
    %v300 = vld [vmem:[#allocation4 + $0x420] sm:$0xff]
    %v301 = vld [vmem:[#allocation4 + $0x428] sm:$0xf]
    %v302 = vld [vmem:[#allocation4 + $0x42c] sm:$0xff]
    %v303 = vld [vmem:[#allocation4 + $0x434] sm:$0xf]
    %v304 = vld [vmem:[#allocation4 + $0x438] sm:$0xff]
    %v305 = vld [vmem:[#allocation4 + $0x440] sm:$0xf]
    %v306 = vld [vmem:[#allocation4 + $0x444] sm:$0xff]
    %v307 = vld [vmem:[#allocation4 + $0x44c] sm:$0xf]
    %v308 = vld [vmem:[#allocation4 + $0x450] sm:$0xff]
    %v309 = vld [vmem:[#allocation4 + $0x458] sm:$0xf]
    %v310 = vld [vmem:[#allocation4 + $0x45c] sm:$0xff]
    %v311 = vld [vmem:[#allocation4 + $0x464] sm:$0xf]
    %v312 = vld [vmem:[#allocation4 + $0x468] sm:$0xff]
    %v313 = vld [vmem:[#allocation4 + $0x470] sm:$0xf]
    %v314 = vld [vmem:[#allocation4 + $0x474] sm:$0xff]
    %v315 = vld [vmem:[#allocation4 + $0x47c] sm:$0xf]
    %v316 = vld [vmem:[#allocation4 + $0x480] sm:$0xff]
    %v317 = vld [vmem:[#allocation4 + $0x488] sm:$0xf]
    %v318 = vld [vmem:[#allocation4 + $0x48c] sm:$0xff]
    %v319 = vld [vmem:[#allocation4 + $0x494] sm:$0xf]
    %v320 = vld [vmem:[%s2] sm:$0x7]
    %v322 = vlaneseq
    %v323 = vshrl.u32 %v322, 7
    %v324 = vsub.s32 0, %v323
    %v325 = vrot.slane %v320, %v324
    %v326 = vlaneseq
    %v327 = vshrl.u32 %v326, 7
    %v328 = vsub.s32 1, %v327
    %v329 = vrot.slane %v320, %v328
    %v330 = vlaneseq
    %v331 = vshrl.u32 %v330, 7
    %v332 = vsub.s32 2, %v331
    %v333 = vrot.slane %v320, %v332
    %v533 = vunpack.c.l.b16 %v124
    %v534 = vunpack.c.h.b16 %v124
    %v535 = vunpack.c.l.b16 %v125
    %v536 = vunpack.c.l.b16 %v126
    %v537 = vunpack.c.h.b16 %v126
    %v538 = vunpack.c.l.b16 %v127
    %v539 = vunpack.c.l.b16 %v128
    %v540 = vunpack.c.h.b16 %v128
    %v541 = vunpack.c.l.b16 %v129
    %v542 = vunpack.c.l.b16 %v130
    %v543 = vunpack.c.h.b16 %v130
    %v544 = vunpack.c.l.b16 %v131
    %v545 = vunpack.c.l.b16 %v132
    %v546 = vunpack.c.h.b16 %v132
    %v547 = vunpack.c.l.b16 %v133
    %v548 = vunpack.c.l.b16 %v134
    %v549 = vunpack.c.h.b16 %v134
    %v550 = vunpack.c.l.b16 %v135
    %v551 = vunpack.c.l.b16 %v136
    %v552 = vunpack.c.h.b16 %v136
    %v553 = vunpack.c.l.b16 %v137
    %v554 = vunpack.c.l.b16 %v138
    %v555 = vunpack.c.h.b16 %v138
    %v556 = vunpack.c.l.b16 %v139
    %v557 = vunpack.c.l.b16 %v140
    %v558 = vunpack.c.h.b16 %v140
    %v559 = vunpack.c.l.b16 %v141
    %v560 = vunpack.c.l.b16 %v142
    %v561 = vunpack.c.h.b16 %v142
    %v562 = vunpack.c.l.b16 %v143
    %v563 = vunpack.c.l.b16 %v144
    %v564 = vunpack.c.h.b16 %v144
    %v565 = vunpack.c.l.b16 %v145
    %v566 = vunpack.c.l.b16 %v146
    %v567 = vunpack.c.h.b16 %v146
    %v568 = vunpack.c.l.b16 %v147
    %v569 = vunpack.c.l.b16 %v148
    %v570 = vunpack.c.h.b16 %v148
    %v571 = vunpack.c.l.b16 %v149
    %v572 = vunpack.c.l.b16 %v150
    %v573 = vunpack.c.h.b16 %v150
    %v574 = vunpack.c.l.b16 %v151
    %v575 = vunpack.c.l.b16 %v152
    %v576 = vunpack.c.h.b16 %v152
    %v577 = vunpack.c.l.b16 %v153
    %v578 = vunpack.c.l.b16 %v154
    %v579 = vunpack.c.h.b16 %v154
    %v580 = vunpack.c.l.b16 %v155
    %v581 = vunpack.c.l.b16 %v156
    %v582 = vunpack.c.h.b16 %v156
    %v583 = vunpack.c.l.b16 %v157
    %v584 = vunpack.c.l.b16 %v158
    %v585 = vunpack.c.h.b16 %v158
    %v586 = vunpack.c.l.b16 %v159
    %v587 = vunpack.c.l.b16 %v160
    %v588 = vunpack.c.h.b16 %v160
    %v589 = vunpack.c.l.b16 %v161
    %v590 = vunpack.c.l.b16 %v162
    %v591 = vunpack.c.h.b16 %v162
    %v592 = vunpack.c.l.b16 %v163
    %v593 = vunpack.c.l.b16 %v164
    %v594 = vunpack.c.h.b16 %v164
    %v595 = vunpack.c.l.b16 %v165
    %v596 = vunpack.c.l.b16 %v166
    %v597 = vunpack.c.h.b16 %v166
    %v598 = vunpack.c.l.b16 %v167
    %v599 = vunpack.c.l.b16 %v168
    %v600 = vunpack.c.h.b16 %v168
    %v601 = vunpack.c.l.b16 %v169
    %v602 = vunpack.c.l.b16 %v170
    %v603 = vunpack.c.h.b16 %v170
    %v604 = vunpack.c.l.b16 %v171
    %v605 = vunpack.c.l.b16 %v172
    %v606 = vunpack.c.h.b16 %v172
    %v607 = vunpack.c.l.b16 %v173
    %v608 = vunpack.c.l.b16 %v174
    %v609 = vunpack.c.h.b16 %v174
    %v610 = vunpack.c.l.b16 %v175
    %v611 = vunpack.c.l.b16 %v176
    %v612 = vunpack.c.h.b16 %v176
    %v613 = vunpack.c.l.b16 %v177
    %v614 = vunpack.c.l.b16 %v178
    %v615 = vunpack.c.h.b16 %v178
    %v616 = vunpack.c.l.b16 %v179
    %v617 = vunpack.c.l.b16 %v180
    %v618 = vunpack.c.h.b16 %v180
    %v619 = vunpack.c.l.b16 %v181
    %v620 = vunpack.c.l.b16 %v182
    %v621 = vunpack.c.h.b16 %v182
    %v622 = vunpack.c.l.b16 %v183
    %v623 = vunpack.c.l.b16 %v184
    %v624 = vunpack.c.h.b16 %v184
    %v625 = vunpack.c.l.b16 %v185
    %v626 = vunpack.c.l.b16 %v186
    %v627 = vunpack.c.h.b16 %v186
    %v628 = vunpack.c.l.b16 %v187
    %v629 = vunpack.c.l.b16 %v188
    %v630 = vunpack.c.h.b16 %v188
    %v631 = vunpack.c.l.b16 %v189
    %v632 = vunpack.c.l.b16 %v190
    %v633 = vunpack.c.h.b16 %v190
    %v634 = vunpack.c.l.b16 %v191
    %v635 = vunpack.c.l.b16 %v192
    %v636 = vunpack.c.h.b16 %v192
    %v637 = vunpack.c.l.b16 %v193
    %v638 = vunpack.c.l.b16 %v194
    %v639 = vunpack.c.h.b16 %v194
    %v640 = vunpack.c.l.b16 %v195
    %v641 = vunpack.c.l.b16 %v196
    %v642 = vunpack.c.h.b16 %v196
    %v643 = vunpack.c.l.b16 %v197
    %v644 = vunpack.c.l.b16 %v198
    %v645 = vunpack.c.h.b16 %v198
    %v646 = vunpack.c.l.b16 %v199
    %v647 = vunpack.c.l.b16 %v200
    %v648 = vunpack.c.h.b16 %v200
    %v649 = vunpack.c.l.b16 %v201
    %v650 = vunpack.c.l.b16 %v202
    %v651 = vunpack.c.h.b16 %v202
    %v652 = vunpack.c.l.b16 %v203
    %v653 = vunpack.c.l.b16 %v204
    %v654 = vunpack.c.h.b16 %v204
    %v655 = vunpack.c.l.b16 %v205
    %v656 = vunpack.c.l.b16 %v206
    %v657 = vunpack.c.h.b16 %v206
    %v658 = vunpack.c.l.b16 %v207
    %v659 = vunpack.c.l.b16 %v208
    %v660 = vunpack.c.h.b16 %v208
    %v661 = vunpack.c.l.b16 %v209
    %v662 = vunpack.c.l.b16 %v210
    %v663 = vunpack.c.h.b16 %v210
    %v664 = vunpack.c.l.b16 %v211
    %v665 = vunpack.c.l.b16 %v212
    %v666 = vunpack.c.h.b16 %v212
    %v667 = vunpack.c.l.b16 %v213
    %v668 = vunpack.c.l.b16 %v214
    %v669 = vunpack.c.h.b16 %v214
    %v670 = vunpack.c.l.b16 %v215
    %v671 = vunpack.c.l.b16 %v216
    %v672 = vunpack.c.h.b16 %v216
    %v673 = vunpack.c.l.b16 %v217
    %v674 = vunpack.c.l.b16 %v218
    %v675 = vunpack.c.h.b16 %v218
    %v676 = vunpack.c.l.b16 %v219
    %v677 = vunpack.c.l.b16 %v220
    %v678 = vunpack.c.h.b16 %v220
    %v679 = vunpack.c.l.b16 %v221
    %v680 = vunpack.c.l.b16 %v222
    %v681 = vunpack.c.h.b16 %v222
    %v682 = vunpack.c.l.b16 %v223
    %v683 = vunpack.c.l.b16 %v224
    %v684 = vunpack.c.h.b16 %v224
    %v685 = vunpack.c.l.b16 %v225
    %v686 = vunpack.c.l.b16 %v226
    %v687 = vunpack.c.h.b16 %v226
    %v688 = vunpack.c.l.b16 %v227
    %v689 = vunpack.c.l.b16 %v228
    %v690 = vunpack.c.h.b16 %v228
    %v691 = vunpack.c.l.b16 %v229
    %v692 = vunpack.c.l.b16 %v230
    %v693 = vunpack.c.h.b16 %v230
    %v694 = vunpack.c.l.b16 %v231
    %v695 = vunpack.c.l.b16 %v232
    %v696 = vunpack.c.h.b16 %v232
    %v697 = vunpack.c.l.b16 %v233
    %v698 = vunpack.c.l.b16 %v234
    %v699 = vunpack.c.h.b16 %v234
    %v700 = vunpack.c.l.b16 %v235
    %v701 = vunpack.c.l.b16 %v236
    %v702 = vunpack.c.h.b16 %v236
    %v703 = vunpack.c.l.b16 %v237
    %v704 = vunpack.c.l.b16 %v238
    %v705 = vunpack.c.h.b16 %v238
    %v706 = vunpack.c.l.b16 %v239
    %v707 = vunpack.c.l.b16 %v240
    %v708 = vunpack.c.h.b16 %v240
    %v709 = vunpack.c.l.b16 %v241
    %v710 = vunpack.c.l.b16 %v242
    %v711 = vunpack.c.h.b16 %v242
    %v712 = vunpack.c.l.b16 %v243
    %v713 = vunpack.c.l.b16 %v244
    %v714 = vunpack.c.h.b16 %v244
    %v715 = vunpack.c.l.b16 %v245
    %v716 = vunpack.c.l.b16 %v246
    %v717 = vunpack.c.h.b16 %v246
    %v718 = vunpack.c.l.b16 %v247
    %v719 = vunpack.c.l.b16 %v248
    %v720 = vunpack.c.h.b16 %v248
    %v721 = vunpack.c.l.b16 %v249
    %v722 = vunpack.c.l.b16 %v250
    %v723 = vunpack.c.h.b16 %v250
    %v724 = vunpack.c.l.b16 %v251
    %v725 = vunpack.c.l.b16 %v252
    %v726 = vunpack.c.h.b16 %v252
    %v727 = vunpack.c.l.b16 %v253
    %v728 = vunpack.c.l.b16 %v254
    %v729 = vunpack.c.h.b16 %v254
    %v730 = vunpack.c.l.b16 %v255
    %v731 = vunpack.c.l.b16 %v256
    %v732 = vunpack.c.h.b16 %v256
    %v733 = vunpack.c.l.b16 %v257
    %v734 = vunpack.c.l.b16 %v258
    %v735 = vunpack.c.h.b16 %v258
    %v736 = vunpack.c.l.b16 %v259
    %v737 = vunpack.c.l.b16 %v260
    %v738 = vunpack.c.h.b16 %v260
    %v739 = vunpack.c.l.b16 %v261
    %v740 = vunpack.c.l.b16 %v262
    %v741 = vunpack.c.h.b16 %v262
    %v742 = vunpack.c.l.b16 %v263
    %v743 = vunpack.c.l.b16 %v264
    %v744 = vunpack.c.h.b16 %v264
    %v745 = vunpack.c.l.b16 %v265
    %v746 = vunpack.c.l.b16 %v266
    %v747 = vunpack.c.h.b16 %v266
    %v748 = vunpack.c.l.b16 %v267
    %v749 = vunpack.c.l.b16 %v268
    %v750 = vunpack.c.h.b16 %v268
    %v751 = vunpack.c.l.b16 %v269
    %v752 = vunpack.c.l.b16 %v270
    %v753 = vunpack.c.h.b16 %v270
    %v754 = vunpack.c.l.b16 %v271
    %v755 = vunpack.c.l.b16 %v272
    %v756 = vunpack.c.h.b16 %v272
    %v757 = vunpack.c.l.b16 %v273
    %v758 = vunpack.c.l.b16 %v274
    %v759 = vunpack.c.h.b16 %v274
    %v760 = vunpack.c.l.b16 %v275
    %v761 = vunpack.c.l.b16 %v276
    %v762 = vunpack.c.h.b16 %v276
    %v763 = vunpack.c.l.b16 %v277
    %v764 = vunpack.c.l.b16 %v278
    %v765 = vunpack.c.h.b16 %v278
    %v766 = vunpack.c.l.b16 %v279
    %v767 = vunpack.c.l.b16 %v280
    %v768 = vunpack.c.h.b16 %v280
    %v769 = vunpack.c.l.b16 %v281
    %v770 = vunpack.c.l.b16 %v282
    %v771 = vunpack.c.h.b16 %v282
    %v772 = vunpack.c.l.b16 %v283
    %v773 = vunpack.c.l.b16 %v284
    %v774 = vunpack.c.h.b16 %v284
    %v775 = vunpack.c.l.b16 %v285
    %v776 = vunpack.c.l.b16 %v286
    %v777 = vunpack.c.h.b16 %v286
    %v778 = vunpack.c.l.b16 %v287
    %v779 = vunpack.c.l.b16 %v288
    %v780 = vunpack.c.h.b16 %v288
    %v781 = vunpack.c.l.b16 %v289
    %v782 = vunpack.c.l.b16 %v290
    %v783 = vunpack.c.h.b16 %v290
    %v784 = vunpack.c.l.b16 %v291
    %v785 = vunpack.c.l.b16 %v292
    %v786 = vunpack.c.h.b16 %v292
    %v787 = vunpack.c.l.b16 %v293
    %v788 = vunpack.c.l.b16 %v294
    %v789 = vunpack.c.h.b16 %v294
    %v790 = vunpack.c.l.b16 %v295
    %v791 = vunpack.c.l.b16 %v296
    %v792 = vunpack.c.h.b16 %v296
    %v793 = vunpack.c.l.b16 %v297
    %v794 = vunpack.c.l.b16 %v298
    %v795 = vunpack.c.h.b16 %v298
    %v796 = vunpack.c.l.b16 %v299
    %v797 = vunpack.c.l.b16 %v300
    %v798 = vunpack.c.h.b16 %v300
    %v799 = vunpack.c.l.b16 %v301
    %v800 = vunpack.c.l.b16 %v302
    %v801 = vunpack.c.h.b16 %v302
    %v802 = vunpack.c.l.b16 %v303
    %v803 = vunpack.c.l.b16 %v304
    %v804 = vunpack.c.h.b16 %v304
    %v805 = vunpack.c.l.b16 %v305
    %v806 = vunpack.c.l.b16 %v306
    %v807 = vunpack.c.h.b16 %v306
    %v808 = vunpack.c.l.b16 %v307
    %v809 = vunpack.c.l.b16 %v308
    %v810 = vunpack.c.h.b16 %v308
    %v811 = vunpack.c.l.b16 %v309
    %v812 = vunpack.c.l.b16 %v310
    %v813 = vunpack.c.h.b16 %v310
    %v814 = vunpack.c.l.b16 %v311
    %v815 = vunpack.c.l.b16 %v312
    %v816 = vunpack.c.h.b16 %v312
    %v817 = vunpack.c.l.b16 %v313
    %v818 = vunpack.c.l.b16 %v314
    %v819 = vunpack.c.h.b16 %v314
    %v820 = vunpack.c.l.b16 %v315
    %v821 = vunpack.c.l.b16 %v316
    %v822 = vunpack.c.h.b16 %v316
    %v823 = vunpack.c.l.b16 %v317
    %v824 = vunpack.c.l.b16 %v318
    %v825 = vunpack.c.h.b16 %v318
    %v826 = vunpack.c.l.b16 %v319
    %v827 = vpack.c.b16 %v536, %v533
    %v828 = vpack.c.b16 %v537, %v534
    %v829 = vpack.c.b16 %v538, %v535
    %v830 = vpack.c.b16 %v542, %v539
    %v831 = vpack.c.b16 %v543, %v540
    %v832 = vpack.c.b16 %v544, %v541
    %v833 = vpack.c.b16 %v548, %v545
    %v834 = vpack.c.b16 %v549, %v546
    %v835 = vpack.c.b16 %v550, %v547
    %v836 = vpack.c.b16 %v554, %v551
    %v837 = vpack.c.b16 %v555, %v552
    %v838 = vpack.c.b16 %v556, %v553
    %v839 = vpack.c.b16 %v560, %v557
    %v840 = vpack.c.b16 %v561, %v558
    %v841 = vpack.c.b16 %v562, %v559
    %v842 = vpack.c.b16 %v566, %v563
    %v843 = vpack.c.b16 %v567, %v564
    %v844 = vpack.c.b16 %v568, %v565
    %v845 = vpack.c.b16 %v572, %v569
    %v846 = vpack.c.b16 %v573, %v570
    %v847 = vpack.c.b16 %v574, %v571
    %v848 = vpack.c.b16 %v578, %v575
    %v849 = vpack.c.b16 %v579, %v576
    %v850 = vpack.c.b16 %v580, %v577
    %v851 = vpack.c.b16 %v584, %v581
    %v852 = vpack.c.b16 %v585, %v582
    %v853 = vpack.c.b16 %v586, %v583
    %v854 = vpack.c.b16 %v590, %v587
    %v855 = vpack.c.b16 %v591, %v588
    %v856 = vpack.c.b16 %v592, %v589
    %v857 = vpack.c.b16 %v596, %v593
    %v858 = vpack.c.b16 %v597, %v594
    %v859 = vpack.c.b16 %v598, %v595
    %v860 = vpack.c.b16 %v602, %v599
    %v861 = vpack.c.b16 %v603, %v600
    %v862 = vpack.c.b16 %v604, %v601
    %v863 = vpack.c.b16 %v608, %v605
    %v864 = vpack.c.b16 %v609, %v606
    %v865 = vpack.c.b16 %v610, %v607
    %v866 = vpack.c.b16 %v614, %v611
    %v867 = vpack.c.b16 %v615, %v612
    %v868 = vpack.c.b16 %v616, %v613
    %v869 = vpack.c.b16 %v620, %v617
    %v870 = vpack.c.b16 %v621, %v618
    %v871 = vpack.c.b16 %v622, %v619
    %v872 = vpack.c.b16 %v626, %v623
    %v873 = vpack.c.b16 %v627, %v624
    %v874 = vpack.c.b16 %v628, %v625
    %v875 = vpack.c.b16 %v632, %v629
    %v876 = vpack.c.b16 %v633, %v630
    %v877 = vpack.c.b16 %v634, %v631
    %v878 = vpack.c.b16 %v638, %v635
    %v879 = vpack.c.b16 %v639, %v636
    %v880 = vpack.c.b16 %v640, %v637
    %v881 = vpack.c.b16 %v644, %v641
    %v882 = vpack.c.b16 %v645, %v642
    %v883 = vpack.c.b16 %v646, %v643
    %v884 = vpack.c.b16 %v650, %v647
    %v885 = vpack.c.b16 %v651, %v648
    %v886 = vpack.c.b16 %v652, %v649
    %v887 = vpack.c.b16 %v656, %v653
    %v888 = vpack.c.b16 %v657, %v654
    %v889 = vpack.c.b16 %v658, %v655
    %v890 = vpack.c.b16 %v662, %v659
    %v891 = vpack.c.b16 %v663, %v660
    %v892 = vpack.c.b16 %v664, %v661
    %v893 = vpack.c.b16 %v668, %v665
    %v894 = vpack.c.b16 %v669, %v666
    %v895 = vpack.c.b16 %v670, %v667
    %v896 = vpack.c.b16 %v674, %v671
    %v897 = vpack.c.b16 %v675, %v672
    %v898 = vpack.c.b16 %v676, %v673
    %v899 = vpack.c.b16 %v680, %v677
    %v900 = vpack.c.b16 %v681, %v678
    %v901 = vpack.c.b16 %v682, %v679
    %v902 = vpack.c.b16 %v686, %v683
    %v903 = vpack.c.b16 %v687, %v684
    %v904 = vpack.c.b16 %v688, %v685
    %v905 = vpack.c.b16 %v692, %v689
    %v906 = vpack.c.b16 %v693, %v690
    %v907 = vpack.c.b16 %v694, %v691
    %v908 = vpack.c.b16 %v698, %v695
    %v909 = vpack.c.b16 %v699, %v696
    %v910 = vpack.c.b16 %v700, %v697
    %v911 = vpack.c.b16 %v704, %v701
    %v912 = vpack.c.b16 %v705, %v702
    %v913 = vpack.c.b16 %v706, %v703
    %v914 = vpack.c.b16 %v710, %v707
    %v915 = vpack.c.b16 %v711, %v708
    %v916 = vpack.c.b16 %v712, %v709
    %v917 = vpack.c.b16 %v716, %v713
    %v918 = vpack.c.b16 %v717, %v714
    %v919 = vpack.c.b16 %v718, %v715
    %v920 = vpack.c.b16 %v722, %v719
    %v921 = vpack.c.b16 %v723, %v720
    %v922 = vpack.c.b16 %v724, %v721
    %v923 = vpack.c.b16 %v728, %v725
    %v924 = vpack.c.b16 %v729, %v726
    %v925 = vpack.c.b16 %v730, %v727
    %v926 = vpack.c.b16 %v734, %v731
    %v927 = vpack.c.b16 %v735, %v732
    %v928 = vpack.c.b16 %v736, %v733
    %v929 = vpack.c.b16 %v740, %v737
    %v930 = vpack.c.b16 %v741, %v738
    %v931 = vpack.c.b16 %v742, %v739
    %v932 = vpack.c.b16 %v746, %v743
    %v933 = vpack.c.b16 %v747, %v744
    %v934 = vpack.c.b16 %v748, %v745
    %v935 = vpack.c.b16 %v752, %v749
    %v936 = vpack.c.b16 %v753, %v750
    %v937 = vpack.c.b16 %v754, %v751
    %v938 = vpack.c.b16 %v758, %v755
    %v939 = vpack.c.b16 %v759, %v756
    %v940 = vpack.c.b16 %v760, %v757
    %v941 = vpack.c.b16 %v764, %v761
    %v942 = vpack.c.b16 %v765, %v762
    %v943 = vpack.c.b16 %v766, %v763
    %v944 = vpack.c.b16 %v770, %v767
    %v945 = vpack.c.b16 %v771, %v768
    %v946 = vpack.c.b16 %v772, %v769
    %v947 = vpack.c.b16 %v776, %v773
    %v948 = vpack.c.b16 %v777, %v774
    %v949 = vpack.c.b16 %v778, %v775
    %v950 = vpack.c.b16 %v782, %v779
    %v951 = vpack.c.b16 %v783, %v780
    %v952 = vpack.c.b16 %v784, %v781
    %v953 = vpack.c.b16 %v788, %v785
    %v954 = vpack.c.b16 %v789, %v786
    %v955 = vpack.c.b16 %v790, %v787
    %v956 = vpack.c.b16 %v794, %v791
    %v957 = vpack.c.b16 %v795, %v792
    %v958 = vpack.c.b16 %v796, %v793
    %v959 = vpack.c.b16 %v800, %v797
    %v960 = vpack.c.b16 %v801, %v798
    %v961 = vpack.c.b16 %v802, %v799
    %v962 = vpack.c.b16 %v806, %v803
    %v963 = vpack.c.b16 %v807, %v804
    %v964 = vpack.c.b16 %v808, %v805
    %v965 = vpack.c.b16 %v812, %v809
    %v966 = vpack.c.b16 %v813, %v810
    %v967 = vpack.c.b16 %v814, %v811
    %v968 = vpack.c.b16 %v818, %v815
    %v969 = vpack.c.b16 %v819, %v816
    %v970 = vpack.c.b16 %v820, %v817
    %v971 = vpack.c.b16 %v824, %v821
    %v972 = vpack.c.b16 %v825, %v822
    %v973 = vpack.c.b16 %v826, %v823
    %vm1121 = vcmask 130048
    %v1123 = vsel %vm1121, %v116, 0
    %v1126 = vsel %vm1121, %v123, 0
    %1128 = vmatprep.subr.bf16.mxu0 %v828
    %1129 = vmatpush1.bf16.msra.mxu0 %v827
    %1130 = vmatprep.subr.bf16.mxu0 %v831
    %1131 = vmatpush1.bf16.msra.mxu0 %v830
    %1132 = vmatprep.subr.bf16.mxu0 %v834
    %1133 = vmatpush1.bf16.msra.mxu0 %v833
    %1134 = vmatprep.subr.bf16.mxu0 %v837
    %1135 = vmatpush1.bf16.msra.mxu0 %v836
    %1136 = vmatprep.subr.bf16.mxu0 %v840
    %1137 = vmatpush1.bf16.msra.mxu0 %v839
    %1138 = vmatprep.subr.bf16.mxu0 %v843
    %1139 = vmatpush1.bf16.msra.mxu0 %v842
    %1140 = vmatprep.subr.bf16.mxu0 %v846
    %1141 = vmatpush1.bf16.msra.mxu0 %v845
    %1142 = vmatprep.subr.bf16.mxu0 %v849
    %1143 = vmatpush1.bf16.msra.mxu0 %v848
    %1144 = vmatprep.subr.bf16.mxu0 %v852
    %1145 = vmatpush1.bf16.msra.mxu0 %v851
    %1146 = vmatprep.subr.bf16.mxu0 %v855
    %1147 = vmatpush1.bf16.msra.mxu0 %v854
    %1148 = vmatprep.subr.bf16.mxu0 %v858
    %1149 = vmatpush1.bf16.msra.mxu0 %v857
    %1150 = vmatprep.subr.bf16.mxu0 %v861
    %1151 = vmatpush1.bf16.msra.mxu0 %v860
    %1152 = vmatprep.subr.bf16.mxu0 %v864
    %1153 = vmatpush1.bf16.msra.mxu0 %v863
    %1154 = vmatprep.subr.bf16.mxu0 %v867
    %1155 = vmatpush1.bf16.msra.mxu0 %v866
    %1156 = vmatprep.subr.bf16.mxu0 %v870
    %1157 = vmatpush1.bf16.msra.mxu0 %v869
    %1158 = vmatprep.subr.bf16.mxu0 %v873
    %1159 = vmatpush1.bf16.msra.mxu0 %v872
    %1160 = vmatprep.mubr.bf16.mxu0 %v111
    %1161 = vmatmul.mubr.bf16.gmra.mrb[0].mxu0 %v110
    %v1162 = vpop.f32.mrb[0].mxu0
    %v1163 = vadd.f32 %v325, %v1162
    %v1164 = vpop.f32.mrb[0].mxu0
    %v1165 = vadd.f32 %v329, %v1164
    %v1166 = vpop.f32.mrb[0].mxu0
    %v1167 = vadd.f32 %v325, %v1166
    %v1168 = vpop.f32.mrb[0].mxu0
    %v1169 = vadd.f32 %v329, %v1168
    %1170 = vmatprep.mubr.bf16.mxu0 %v118
    %1171 = vmatmul.mubr.bf16.gmra.mrb[0].mxu0 %v117
    %v1172 = vpop.f32.mrb[0].mxu0
    %v1173 = vadd.f32 %v325, %v1172
    %v1174 = vpop.f32.mrb[0].mxu0
    %v1175 = vadd.f32 %v329, %v1174
    %v1176 = vpop.f32.mrb[0].mxu0
    %v1177 = vadd.f32 %v325, %v1176
    %v1178 = vpop.f32.mrb[0].mxu0
    %v1179 = vadd.f32 %v329, %v1178
    %1180 = vdwg.mxu0
    %1181 = vmatprep.subr.bf16.mxu0 %v876
    %1182 = vmatpush1.bf16.msra.mxu0 %v875
    %1183 = vmatprep.subr.bf16.mxu0 %v879
    %1184 = vmatpush1.bf16.msra.mxu0 %v878
    %1185 = vmatprep.subr.bf16.mxu0 %v882
    %1186 = vmatpush1.bf16.msra.mxu0 %v881
    %1187 = vmatprep.subr.bf16.mxu0 %v885
    %1188 = vmatpush1.bf16.msra.mxu0 %v884
    %1189 = vmatprep.subr.bf16.mxu0 %v888
    %1190 = vmatpush1.bf16.msra.mxu0 %v887
    %1191 = vmatprep.subr.bf16.mxu0 %v891
    %1192 = vmatpush1.bf16.msra.mxu0 %v890
    %1193 = vmatprep.subr.bf16.mxu0 %v894
    %1194 = vmatpush1.bf16.msra.mxu0 %v893
    %1195 = vmatprep.subr.bf16.mxu0 %v897
    %1196 = vmatpush1.bf16.msra.mxu0 %v896
    %1197 = vmatprep.subr.bf16.mxu0 %v900
    %1198 = vmatpush1.bf16.msra.mxu0 %v899
    %1199 = vmatprep.subr.bf16.mxu0 %v903
    %1200 = vmatpush1.bf16.msra.mxu0 %v902
    %1201 = vmatprep.subr.bf16.mxu0 %v906
    %1202 = vmatpush1.bf16.msra.mxu0 %v905
    %1203 = vmatprep.subr.bf16.mxu0 %v909
    %1204 = vmatpush1.bf16.msra.mxu0 %v908
    %1205 = vmatprep.subr.bf16.mxu0 %v912
    %1206 = vmatpush1.bf16.msra.mxu0 %v911
    %1207 = vmatprep.subr.bf16.mxu0 %v915
    %1208 = vmatpush1.bf16.msra.mxu0 %v914
    %1209 = vmatprep.subr.bf16.mxu0 %v918
    %1210 = vmatpush1.bf16.msra.mxu0 %v917
    %1211 = vmatprep.subr.bf16.mxu0 %v921
    %1212 = vmatpush1.bf16.msra.mxu0 %v920
    %1213 = vmatprep.mubr.bf16.mxu0 %v113
    %1214 = vmatmul.mubr.bf16.gmra.mrb[0].mxu0 %v112
    %v1215 = vpop.f32.mrb[0].mxu0
    %v1216 = vadd.f32 %v1163, %v1215
    %v1217 = vpop.f32.mrb[0].mxu0
    %v1218 = vadd.f32 %v1165, %v1217
    %v1219 = vpop.f32.mrb[0].mxu0
    %v1220 = vadd.f32 %v1167, %v1219
    %v1221 = vpop.f32.mrb[0].mxu0
    %v1222 = vadd.f32 %v1169, %v1221
    %1223 = vmatprep.mubr.bf16.mxu0 %v120
    %1224 = vmatmul.mubr.bf16.gmra.mrb[0].mxu0 %v119
    %v1225 = vpop.f32.mrb[0].mxu0
    %v1226 = vadd.f32 %v1173, %v1225
    %v1227 = vpop.f32.mrb[0].mxu0
    %v1228 = vadd.f32 %v1175, %v1227
    %v1229 = vpop.f32.mrb[0].mxu0
    %v1230 = vadd.f32 %v1177, %v1229
    %v1231 = vpop.f32.mrb[0].mxu0
    %v1232 = vadd.f32 %v1179, %v1231
    %1233 = vdwg.mxu0
    %1234 = vmatprep.subr.bf16.mxu0 %v924
    %1235 = vmatpush1.bf16.msra.mxu0 %v923
    %1236 = vmatprep.subr.bf16.mxu0 %v927
    %1237 = vmatpush1.bf16.msra.mxu0 %v926
    %1238 = vmatprep.subr.bf16.mxu0 %v930
    %1239 = vmatpush1.bf16.msra.mxu0 %v929
    %1240 = vmatprep.subr.bf16.mxu0 %v933
    %1241 = vmatpush1.bf16.msra.mxu0 %v932
    %1242 = vmatprep.subr.bf16.mxu0 %v936
    %1243 = vmatpush1.bf16.msra.mxu0 %v935
    %1244 = vmatprep.subr.bf16.mxu0 %v939
    %1245 = vmatpush1.bf16.msra.mxu0 %v938
    %1246 = vmatprep.subr.bf16.mxu0 %v942
    %1247 = vmatpush1.bf16.msra.mxu0 %v941
    %1248 = vmatprep.subr.bf16.mxu0 %v945
    %1249 = vmatpush1.bf16.msra.mxu0 %v944
    %1250 = vmatprep.subr.bf16.mxu0 %v948
    %1251 = vmatpush1.bf16.msra.mxu0 %v947
    %1252 = vmatprep.subr.bf16.mxu0 %v951
    %1253 = vmatpush1.bf16.msra.mxu0 %v950
    %1254 = vmatprep.subr.bf16.mxu0 %v954
    %1255 = vmatpush1.bf16.msra.mxu0 %v953
    %1256 = vmatprep.subr.bf16.mxu0 %v957
    %1257 = vmatpush1.bf16.msra.mxu0 %v956
    %1258 = vmatprep.subr.bf16.mxu0 %v960
    %1259 = vmatpush1.bf16.msra.mxu0 %v959
    %1260 = vmatprep.subr.bf16.mxu0 %v963
    %1261 = vmatpush1.bf16.msra.mxu0 %v962
    %1262 = vmatprep.subr.bf16.mxu0 %v966
    %1263 = vmatpush1.bf16.msra.mxu0 %v965
    %1264 = vmatprep.subr.bf16.mxu0 %v969
    %1265 = vmatpush1.bf16.msra.mxu0 %v968
    %1266 = vmatprep.mubr.bf16.mxu0 %v115
    %1267 = vmatmul.mubr.bf16.gmra.mrb[0].mxu0 %v114
    %v1268 = vpop.f32.mrb[0].mxu0
    %v1269 = vadd.f32 %v1216, %v1268
    %v1270 = vpop.f32.mrb[0].mxu0
    %v1271 = vadd.f32 %v1218, %v1270
    %v1272 = vpop.f32.mrb[0].mxu0
    %v1273 = vadd.f32 %v1220, %v1272
    %v1274 = vpop.f32.mrb[0].mxu0
    %v1275 = vadd.f32 %v1222, %v1274
    %1276 = vmatprep.mubr.bf16.mxu0 %v122
    %1277 = vmatmul.mubr.bf16.gmra.mrb[0].mxu0 %v121
    %v1278 = vpop.f32.mrb[0].mxu0
    %v1279 = vadd.f32 %v1226, %v1278
    %v1280 = vpop.f32.mrb[0].mxu0
    %v1281 = vadd.f32 %v1228, %v1280
    %v1282 = vpop.f32.mrb[0].mxu0
    %v1283 = vadd.f32 %v1230, %v1282
    %v1284 = vpop.f32.mrb[0].mxu0
    %v1285 = vadd.f32 %v1232, %v1284
    %1286 = vdwg.mxu0
    %1287 = vmatprep.subr.bf16.mxu0 %v972
    %1288 = vmatpush1.bf16.msra.mxu0 %v971
    %1289 = vmatprep.subr.bf16.mxu0 0
    %1290 = vmatpush1.bf16.msra.mxu0 0
    %1291 = vmatprep.subr.bf16.mxu0 0
    %1292 = vmatpush1.bf16.msra.mxu0 0
    %1293 = vmatprep.subr.bf16.mxu0 0
    %1294 = vmatpush1.bf16.msra.mxu0 0
    %1295 = vmatprep.subr.bf16.mxu0 0
    %1296 = vmatpush1.bf16.msra.mxu0 0
    %1297 = vmatprep.subr.bf16.mxu0 0
    %1298 = vmatpush1.bf16.msra.mxu0 0
    %1299 = vmatprep.subr.bf16.mxu0 0
    %1300 = vmatpush1.bf16.msra.mxu0 0
    %1301 = vmatprep.subr.bf16.mxu0 0
    %1302 = vmatpush1.bf16.msra.mxu0 0
    %1303 = vmatprep.subr.bf16.mxu0 0
    %1304 = vmatpush1.bf16.msra.mxu0 0
    %1305 = vmatprep.subr.bf16.mxu0 0
    %1306 = vmatpush1.bf16.msra.mxu0 0
    %1307 = vmatprep.subr.bf16.mxu0 0
    %1308 = vmatpush1.bf16.msra.mxu0 0
    %1309 = vmatprep.subr.bf16.mxu0 0
    %1310 = vmatpush1.bf16.msra.mxu0 0
    %1311 = vmatprep.subr.bf16.mxu0 0
    %1312 = vmatpush1.bf16.msra.mxu0 0
    %1313 = vmatprep.subr.bf16.mxu0 0
    %1314 = vmatpush1.bf16.msra.mxu0 0
    %1315 = vmatprep.subr.bf16.mxu0 0
    %1316 = vmatpush1.bf16.msra.mxu0 0
    %1317 = vmatprep.subr.bf16.mxu0 0
    %1318 = vmatpush1.bf16.msra.mxu0 0
    %1319 = vmatprep.mubr.bf16.mxu0 0
    %1320 = vmatmul.mubr.bf16.gmra.mrb[0].mxu0 %v1123
    %v1321 = vpop.f32.mrb[0].mxu0
    %v1322 = vadd.f32 %v1269, %v1321
    %v1323 = vpop.f32.mrb[0].mxu0
    %v1324 = vadd.f32 %v1271, %v1323
    %v1325 = vpop.f32.mrb[0].mxu0
    %v1326 = vadd.f32 %v1273, %v1325
    %v1327 = vpop.f32.mrb[0].mxu0
    %v1328 = vadd.f32 %v1275, %v1327
    %1329 = vmatprep.mubr.bf16.mxu0 0
    %1330 = vmatmul.mubr.bf16.gmra.mrb[0].mxu0 %v1126
    %v1331 = vpop.f32.mrb[0].mxu0
    %v1332 = vadd.f32 %v1279, %v1331
    %v1333 = vpop.f32.mrb[0].mxu0
    %v1334 = vadd.f32 %v1281, %v1333
    %v1335 = vpop.f32.mrb[0].mxu0
    %v1336 = vadd.f32 %v1283, %v1335
    %v1337 = vpop.f32.mrb[0].mxu0
    %v1338 = vadd.f32 %v1285, %v1337
    %1339 = vdwg.mxu0
    %1340 = vmatprep.subr.bf16.mxu0 0
    %1341 = vmatpush1.bf16.msra.mxu0 %v829
    %1342 = vmatprep.subr.bf16.mxu0 0
    %1343 = vmatpush1.bf16.msra.mxu0 %v832
    %1344 = vmatprep.subr.bf16.mxu0 0
    %1345 = vmatpush1.bf16.msra.mxu0 %v835
    %1346 = vmatprep.subr.bf16.mxu0 0
    %1347 = vmatpush1.bf16.msra.mxu0 %v838
    %1348 = vmatprep.subr.bf16.mxu0 0
    %1349 = vmatpush1.bf16.msra.mxu0 %v841
    %1350 = vmatprep.subr.bf16.mxu0 0
    %1351 = vmatpush1.bf16.msra.mxu0 %v844
    %1352 = vmatprep.subr.bf16.mxu0 0
    %1353 = vmatpush1.bf16.msra.mxu0 %v847
    %1354 = vmatprep.subr.bf16.mxu0 0
    %1355 = vmatpush1.bf16.msra.mxu0 %v850
    %1356 = vmatprep.subr.bf16.mxu0 0
    %1357 = vmatpush1.bf16.msra.mxu0 %v853
    %1358 = vmatprep.subr.bf16.mxu0 0
    %1359 = vmatpush1.bf16.msra.mxu0 %v856
    %1360 = vmatprep.subr.bf16.mxu0 0
    %1361 = vmatpush1.bf16.msra.mxu0 %v859
    %1362 = vmatprep.subr.bf16.mxu0 0
    %1363 = vmatpush1.bf16.msra.mxu0 %v862
    %1364 = vmatprep.subr.bf16.mxu0 0
    %1365 = vmatpush1.bf16.msra.mxu0 %v865
    %1366 = vmatprep.subr.bf16.mxu0 0
    %1367 = vmatpush1.bf16.msra.mxu0 %v868
    %1368 = vmatprep.subr.bf16.mxu0 0
    %1369 = vmatpush1.bf16.msra.mxu0 %v871
    %1370 = vmatprep.subr.bf16.mxu0 0
    %1371 = vmatpush1.bf16.msra.mxu0 %v874
    %1372 = vmatprep.mubr.bf16.mxu0 %v111
    %1373 = vmatmul.mubr.bf16.gmra.mrb[0].mxu0 %v110
    %v1374 = vpop.f32.mrb[0].mxu0
    %v1375 = vadd.f32 %v333, %v1374
    %v1376 = vpop.f32.mrb[0].mxu0
    %v1377 = vpop.f32.mrb[0].mxu0
    %v1378 = vadd.f32 %v333, %v1377
    %v1379 = vpop.f32.mrb[0].mxu0
    %1380 = vmatprep.mubr.bf16.mxu0 %v118
    %1381 = vmatmul.mubr.bf16.gmra.mrb[0].mxu0 %v117
    %v1382 = vpop.f32.mrb[0].mxu0
    %v1383 = vadd.f32 %v333, %v1382
    %v1384 = vpop.f32.mrb[0].mxu0
    %v1385 = vpop.f32.mrb[0].mxu0
    %v1386 = vadd.f32 %v333, %v1385
    %v1387 = vpop.f32.mrb[0].mxu0
    %1388 = vdwg.mxu0
    %1389 = vmatprep.subr.bf16.mxu0 0
    %1390 = vmatpush1.bf16.msra.mxu0 %v877
    %1391 = vmatprep.subr.bf16.mxu0 0
    %1392 = vmatpush1.bf16.msra.mxu0 %v880
    %1393 = vmatprep.subr.bf16.mxu0 0
    %1394 = vmatpush1.bf16.msra.mxu0 %v883
    %1395 = vmatprep.subr.bf16.mxu0 0
    %1396 = vmatpush1.bf16.msra.mxu0 %v886
    %1397 = vmatprep.subr.bf16.mxu0 0
    %1398 = vmatpush1.bf16.msra.mxu0 %v889
    %1399 = vmatprep.subr.bf16.mxu0 0
    %1400 = vmatpush1.bf16.msra.mxu0 %v892
    %1401 = vmatprep.subr.bf16.mxu0 0
    %1402 = vmatpush1.bf16.msra.mxu0 %v895
    %1403 = vmatprep.subr.bf16.mxu0 0
    %1404 = vmatpush1.bf16.msra.mxu0 %v898
    %1405 = vmatprep.subr.bf16.mxu0 0
    %1406 = vmatpush1.bf16.msra.mxu0 %v901
    %1407 = vmatprep.subr.bf16.mxu0 0
    %1408 = vmatpush1.bf16.msra.mxu0 %v904
    %1409 = vmatprep.subr.bf16.mxu0 0
    %1410 = vmatpush1.bf16.msra.mxu0 %v907
    %1411 = vmatprep.subr.bf16.mxu0 0
    %1412 = vmatpush1.bf16.msra.mxu0 %v910
    %1413 = vmatprep.subr.bf16.mxu0 0
    %1414 = vmatpush1.bf16.msra.mxu0 %v913
    %1415 = vmatprep.subr.bf16.mxu0 0
    %1416 = vmatpush1.bf16.msra.mxu0 %v916
    %1417 = vmatprep.subr.bf16.mxu0 0
    %1418 = vmatpush1.bf16.msra.mxu0 %v919
    %1419 = vmatprep.subr.bf16.mxu0 0
    %1420 = vmatpush1.bf16.msra.mxu0 %v922
    %1421 = vmatprep.mubr.bf16.mxu0 %v113
    %1422 = vmatmul.mubr.bf16.gmra.mrb[0].mxu0 %v112
    %v1423 = vpop.f32.mrb[0].mxu0
    %v1424 = vadd.f32 %v1375, %v1423
    %v1425 = vpop.f32.mrb[0].mxu0
    %v1426 = vpop.f32.mrb[0].mxu0
    %v1427 = vadd.f32 %v1378, %v1426
    %v1428 = vpop.f32.mrb[0].mxu0
    %1429 = vmatprep.mubr.bf16.mxu0 %v120
    %1430 = vmatmul.mubr.bf16.gmra.mrb[0].mxu0 %v119
    %v1431 = vpop.f32.mrb[0].mxu0
    %v1432 = vadd.f32 %v1383, %v1431
    %v1433 = vpop.f32.mrb[0].mxu0
    %v1434 = vpop.f32.mrb[0].mxu0
    %v1435 = vadd.f32 %v1386, %v1434
    %v1436 = vpop.f32.mrb[0].mxu0
    %1437 = vdwg.mxu0
    %1438 = vmatprep.subr.bf16.mxu0 0
    %1439 = vmatpush1.bf16.msra.mxu0 %v925
    %1440 = vmatprep.subr.bf16.mxu0 0
    %1441 = vmatpush1.bf16.msra.mxu0 %v928
    %1442 = vmatprep.subr.bf16.mxu0 0
    %1443 = vmatpush1.bf16.msra.mxu0 %v931
    %1444 = vmatprep.subr.bf16.mxu0 0
    %1445 = vmatpush1.bf16.msra.mxu0 %v934
    %1446 = vmatprep.subr.bf16.mxu0 0
    %1447 = vmatpush1.bf16.msra.mxu0 %v937
    %1448 = vmatprep.subr.bf16.mxu0 0
    %1449 = vmatpush1.bf16.msra.mxu0 %v940
    %1450 = vmatprep.subr.bf16.mxu0 0
    %1451 = vmatpush1.bf16.msra.mxu0 %v943
    %1452 = vmatprep.subr.bf16.mxu0 0
    %1453 = vmatpush1.bf16.msra.mxu0 %v946
    %1454 = vmatprep.subr.bf16.mxu0 0
    %1455 = vmatpush1.bf16.msra.mxu0 %v949
    %1456 = vmatprep.subr.bf16.mxu0 0
    %1457 = vmatpush1.bf16.msra.mxu0 %v952
    %1458 = vmatprep.subr.bf16.mxu0 0
    %1459 = vmatpush1.bf16.msra.mxu0 %v955
    %1460 = vmatprep.subr.bf16.mxu0 0
    %1461 = vmatpush1.bf16.msra.mxu0 %v958
    %1462 = vmatprep.subr.bf16.mxu0 0
    %1463 = vmatpush1.bf16.msra.mxu0 %v961
    %1464 = vmatprep.subr.bf16.mxu0 0
    %1465 = vmatpush1.bf16.msra.mxu0 %v964
    %1466 = vmatprep.subr.bf16.mxu0 0
    %1467 = vmatpush1.bf16.msra.mxu0 %v967
    %1468 = vmatprep.subr.bf16.mxu0 0
    %1469 = vmatpush1.bf16.msra.mxu0 %v970
    %1470 = vmatprep.mubr.bf16.mxu0 %v115
    %1471 = vmatmul.mubr.bf16.gmra.mrb[0].mxu0 %v114
    %v1472 = vpop.f32.mrb[0].mxu0
    %v1473 = vadd.f32 %v1424, %v1472
    %v1474 = vpop.f32.mrb[0].mxu0
    %v1475 = vpop.f32.mrb[0].mxu0
    %v1476 = vadd.f32 %v1427, %v1475
    %v1477 = vpop.f32.mrb[0].mxu0
    %1478 = vmatprep.mubr.bf16.mxu0 %v122
    %1479 = vmatmul.mubr.bf16.gmra.mrb[0].mxu0 %v121
    %v1480 = vpop.f32.mrb[0].mxu0
    %v1481 = vadd.f32 %v1432, %v1480
    %v1482 = vpop.f32.mrb[0].mxu0
    %v1483 = vpop.f32.mrb[0].mxu0
    %v1484 = vadd.f32 %v1435, %v1483
    %v1485 = vpop.f32.mrb[0].mxu0
    %1486 = vdwg.mxu0
    %1487 = vmatprep.subr.bf16.mxu0 0
    %1488 = vmatpush1.bf16.msra.mxu0 %v973
    %1489 = vmatprep.subr.bf16.mxu0 0
    %1490 = vmatpush1.bf16.msra.mxu0 0
    %1491 = vmatprep.subr.bf16.mxu0 0
    %1492 = vmatpush1.bf16.msra.mxu0 0
    %1493 = vmatprep.subr.bf16.mxu0 0
    %1494 = vmatpush1.bf16.msra.mxu0 0
    %1495 = vmatprep.subr.bf16.mxu0 0
    %1496 = vmatpush1.bf16.msra.mxu0 0
    %1497 = vmatprep.subr.bf16.mxu0 0
    %1498 = vmatpush1.bf16.msra.mxu0 0
    %1499 = vmatprep.subr.bf16.mxu0 0
    %1500 = vmatpush1.bf16.msra.mxu0 0
    %1501 = vmatprep.subr.bf16.mxu0 0
    %1502 = vmatpush1.bf16.msra.mxu0 0
    %1503 = vmatprep.subr.bf16.mxu0 0
    %1504 = vmatpush1.bf16.msra.mxu0 0
    %1505 = vmatprep.subr.bf16.mxu0 0
    %1506 = vmatpush1.bf16.msra.mxu0 0
    %1507 = vmatprep.subr.bf16.mxu0 0
    %1508 = vmatpush1.bf16.msra.mxu0 0
    %1509 = vmatprep.subr.bf16.mxu0 0
    %1510 = vmatpush1.bf16.msra.mxu0 0
    %1511 = vmatprep.subr.bf16.mxu0 0
    %1512 = vmatpush1.bf16.msra.mxu0 0
    %1513 = vmatprep.subr.bf16.mxu0 0
    %1514 = vmatpush1.bf16.msra.mxu0 0
    %1515 = vmatprep.subr.bf16.mxu0 0
    %1516 = vmatpush1.bf16.msra.mxu0 0
    %1517 = vmatprep.subr.bf16.mxu0 0
    %1518 = vmatpush1.bf16.msra.mxu0 0
    %1519 = vmatprep.mubr.bf16.mxu0 0
    %1520 = vmatmul.mubr.bf16.gmra.mrb[0].mxu0 %v1123
    %v1521 = vpop.f32.mrb[0].mxu0
    %v1522 = vadd.f32 %v1473, %v1521
    %v1523 = vpop.f32.mrb[0].mxu0
    %v1524 = vpop.f32.mrb[0].mxu0
    %v1525 = vadd.f32 %v1476, %v1524
    %v1526 = vpop.f32.mrb[0].mxu0
    %1527 = vmatprep.mubr.bf16.mxu0 0
    %1528 = vmatmul.mubr.bf16.gmra.mrb[0].mxu0 %v1126
    %v1529 = vpop.f32.mrb[0].mxu0
    %v1530 = vadd.f32 %v1481, %v1529
    %v1531 = vpop.f32.mrb[0].mxu0
    %v1532 = vpop.f32.mrb[0].mxu0
    %v1533 = vadd.f32 %v1484, %v1532
    %v1534 = vpop.f32.mrb[0].mxu0
    %1535 = vdwg.mxu0
    %v1536 = vpack.c.bf16 %v1326, %v1322
    %v1537 = vpack.c.bf16 %v1328, %v1324
    %v1538 = vpack.c.bf16 %v1525, %v1522
    %v1539 = vpack.c.bf16 %v1336, %v1332
    %v1540 = vpack.c.bf16 %v1338, %v1334
    %v1541 = vpack.c.bf16 %v1533, %v1530
    %v1542 = vld [vmem:[#allocation6] sm:$0xf]
    %v1543 = vld [vmem:[#allocation6 + $0x4] sm:$0xf]
    %v1544 = vld [vmem:[#allocation6 + $0x8] sm:$0xf]
    %v1545 = vld [vmem:[#allocation6 + $0xc] sm:$0xf]
    %v1546 = vld [vmem:[#allocation6 + $0x10] sm:$0xf]
    %v1547 = vld [vmem:[#allocation6 + $0x14] sm:$0xf]
    %v1548 = vld [vmem:[#allocation6 + $0x18] sm:$0xf]
    %v1549 = vld [vmem:[#allocation6 + $0x1c] sm:$0xf]
    %v1550 = vld [vmem:[#allocation6 + $0x20] sm:$0xf]
    %v1551 = vld [vmem:[#allocation6 + $0x24] sm:$0xf]
    %v1552 = vld [vmem:[#allocation6 + $0x28] sm:$0xf]
    %v1553 = vld [vmem:[#allocation6 + $0x2c] sm:$0xf]
    %v1554 = vld [vmem:[#allocation6 + $0x30] sm:$0xf]
    %v1555 = vld [vmem:[#allocation6 + $0x34] sm:$0xf]
    %v1556 = vld [vmem:[#allocation6 + $0x38] sm:$0xf]
    %v1557 = vld [vmem:[#allocation6 + $0x3c] sm:$0xf]
    %v1558 = vld [vmem:[#allocation6 + $0x40] sm:$0xf]
    %v1559 = vld [vmem:[#allocation6 + $0x44] sm:$0xf]
    %v1560 = vld [vmem:[#allocation6 + $0x48] sm:$0xf]
    %v1561 = vld [vmem:[#allocation6 + $0x4c] sm:$0xf]
    %v1562 = vld [vmem:[#allocation6 + $0x50] sm:$0xf]
    %v1563 = vld [vmem:[#allocation6 + $0x54] sm:$0xf]
    %v1564 = vld [vmem:[#allocation6 + $0x58] sm:$0xf]
    %v1565 = vld [vmem:[#allocation6 + $0x5c] sm:$0xf]
    %v1566 = vld [vmem:[#allocation6 + $0x60] sm:$0xf]
    %v1567 = vld [vmem:[#allocation6 + $0x64] sm:$0xf]
    %v1568 = vld [vmem:[#allocation6 + $0x68] sm:$0xf]
    %v1569 = vld [vmem:[#allocation6 + $0x6c] sm:$0xf]
    %v1570 = vld [vmem:[#allocation6 + $0x70] sm:$0xf]
    %v1571 = vld [vmem:[#allocation6 + $0x74] sm:$0xf]
    %v1572 = vld [vmem:[#allocation6 + $0x78] sm:$0xf]
    %v1573 = vld [vmem:[#allocation6 + $0x7c] sm:$0xf]
    %v1574 = vld [vmem:[#allocation6 + $0x80] sm:$0xf]
    %v1575 = vld [vmem:[#allocation6 + $0x84] sm:$0xf]
    %v1576 = vld [vmem:[#allocation6 + $0x88] sm:$0xf]
    %v1577 = vld [vmem:[#allocation6 + $0x8c] sm:$0xf]
    %v1578 = vld [vmem:[#allocation6 + $0x90] sm:$0xf]
    %v1579 = vld [vmem:[#allocation6 + $0x94] sm:$0xf]
    %v1580 = vld [vmem:[#allocation6 + $0x98] sm:$0xf]
    %v1581 = vld [vmem:[#allocation6 + $0x9c] sm:$0xf]
    %v1582 = vld [vmem:[#allocation6 + $0xa0] sm:$0xf]
    %v1583 = vld [vmem:[#allocation6 + $0xa4] sm:$0xf]
    %v1584 = vld [vmem:[#allocation6 + $0xa8] sm:$0xf]
    %v1585 = vld [vmem:[#allocation6 + $0xac] sm:$0xf]
    %v1586 = vld [vmem:[#allocation6 + $0xb0] sm:$0xf]
    %v1587 = vld [vmem:[#allocation6 + $0xb4] sm:$0xf]
    %v1588 = vld [vmem:[#allocation6 + $0xb8] sm:$0xf]
    %v1589 = vld [vmem:[#allocation6 + $0xbc] sm:$0xf]
    %v1590 = vld [vmem:[%s4] sm:$0x1]
    %v1592 = vlaneseq
    %v1593 = vshrl.u32 %v1592, 7
    %v1594 = vsub.s32 0, %v1593
    %v1595 = vrot.slane %v1590, %v1594
    %v1645 = vunpack.c.l.b16 %v1542
    %v1646 = vunpack.c.l.b16 %v1543
    %v1647 = vunpack.c.l.b16 %v1544
    %v1648 = vunpack.c.l.b16 %v1545
    %v1649 = vunpack.c.l.b16 %v1546
    %v1650 = vunpack.c.l.b16 %v1547
    %v1651 = vunpack.c.l.b16 %v1548
    %v1652 = vunpack.c.l.b16 %v1549
    %v1653 = vunpack.c.l.b16 %v1550
    %v1654 = vunpack.c.l.b16 %v1551
    %v1655 = vunpack.c.l.b16 %v1552
    %v1656 = vunpack.c.l.b16 %v1553
    %v1657 = vunpack.c.l.b16 %v1554
    %v1658 = vunpack.c.l.b16 %v1555
    %v1659 = vunpack.c.l.b16 %v1556
    %v1660 = vunpack.c.l.b16 %v1557
    %v1661 = vunpack.c.l.b16 %v1558
    %v1662 = vunpack.c.l.b16 %v1559
    %v1663 = vunpack.c.l.b16 %v1560
    %v1664 = vunpack.c.l.b16 %v1561
    %v1665 = vunpack.c.l.b16 %v1562
    %v1666 = vunpack.c.l.b16 %v1563
    %v1667 = vunpack.c.l.b16 %v1564
    %v1668 = vunpack.c.l.b16 %v1565
    %v1669 = vunpack.c.l.b16 %v1566
    %v1670 = vunpack.c.l.b16 %v1567
    %v1671 = vunpack.c.l.b16 %v1568
    %v1672 = vunpack.c.l.b16 %v1569
    %v1673 = vunpack.c.l.b16 %v1570
    %v1674 = vunpack.c.l.b16 %v1571
    %v1675 = vunpack.c.l.b16 %v1572
    %v1676 = vunpack.c.l.b16 %v1573
    %v1677 = vunpack.c.l.b16 %v1574
    %v1678 = vunpack.c.l.b16 %v1575
    %v1679 = vunpack.c.l.b16 %v1576
    %v1680 = vunpack.c.l.b16 %v1577
    %v1681 = vunpack.c.l.b16 %v1578
    %v1682 = vunpack.c.l.b16 %v1579
    %v1683 = vunpack.c.l.b16 %v1580
    %v1684 = vunpack.c.l.b16 %v1581
    %v1685 = vunpack.c.l.b16 %v1582
    %v1686 = vunpack.c.l.b16 %v1583
    %v1687 = vunpack.c.l.b16 %v1584
    %v1688 = vunpack.c.l.b16 %v1585
    %v1689 = vunpack.c.l.b16 %v1586
    %v1690 = vunpack.c.l.b16 %v1587
    %v1691 = vunpack.c.l.b16 %v1588
    %v1692 = vunpack.c.l.b16 %v1589
    %v1693 = vpack.c.b16 %v1646, %v1645
    %v1694 = vpack.c.b16 %v1648, %v1647
    %v1695 = vpack.c.b16 %v1650, %v1649
    %v1696 = vpack.c.b16 %v1652, %v1651
    %v1697 = vpack.c.b16 %v1654, %v1653
    %v1698 = vpack.c.b16 %v1656, %v1655
    %v1699 = vpack.c.b16 %v1658, %v1657
    %v1700 = vpack.c.b16 %v1660, %v1659
    %v1701 = vpack.c.b16 %v1662, %v1661
    %v1702 = vpack.c.b16 %v1664, %v1663
    %v1703 = vpack.c.b16 %v1666, %v1665
    %v1704 = vpack.c.b16 %v1668, %v1667
    %v1705 = vpack.c.b16 %v1670, %v1669
    %v1706 = vpack.c.b16 %v1672, %v1671
    %v1707 = vpack.c.b16 %v1674, %v1673
    %v1708 = vpack.c.b16 %v1676, %v1675
    %v1709 = vpack.c.b16 %v1678, %v1677
    %v1710 = vpack.c.b16 %v1680, %v1679
    %v1711 = vpack.c.b16 %v1682, %v1681
    %v1712 = vpack.c.b16 %v1684, %v1683
    %v1713 = vpack.c.b16 %v1686, %v1685
    %v1714 = vpack.c.b16 %v1688, %v1687
    %v1715 = vpack.c.b16 %v1690, %v1689
    %v1716 = vpack.c.b16 %v1692, %v1691
    %1741 = vmatprep.subr.bf16.mxu0 0
    %1742 = vmatpush1.bf16.msra.mxu0 %v1693
    %1743 = vmatprep.subr.bf16.mxu0 0
    %1744 = vmatpush1.bf16.msra.mxu0 %v1694
    %1745 = vmatprep.subr.bf16.mxu0 0
    %1746 = vmatpush1.bf16.msra.mxu0 %v1695
    %1747 = vmatprep.subr.bf16.mxu0 0
    %1748 = vmatpush1.bf16.msra.mxu0 %v1696
    %1749 = vmatprep.subr.bf16.mxu0 0
    %1750 = vmatpush1.bf16.msra.mxu0 %v1697
    %1751 = vmatprep.subr.bf16.mxu0 0
    %1752 = vmatpush1.bf16.msra.mxu0 %v1698
    %1753 = vmatprep.subr.bf16.mxu0 0
    %1754 = vmatpush1.bf16.msra.mxu0 %v1699
    %1755 = vmatprep.subr.bf16.mxu0 0
    %1756 = vmatpush1.bf16.msra.mxu0 %v1700
    %1757 = vmatprep.subr.bf16.mxu0 0
    %1758 = vmatpush1.bf16.msra.mxu0 %v1701
    %1759 = vmatprep.subr.bf16.mxu0 0
    %1760 = vmatpush1.bf16.msra.mxu0 %v1702
    %1761 = vmatprep.subr.bf16.mxu0 0
    %1762 = vmatpush1.bf16.msra.mxu0 %v1703
    %1763 = vmatprep.subr.bf16.mxu0 0
    %1764 = vmatpush1.bf16.msra.mxu0 %v1704
    %1765 = vmatprep.subr.bf16.mxu0 0
    %1766 = vmatpush1.bf16.msra.mxu0 %v1705
    %1767 = vmatprep.subr.bf16.mxu0 0
    %1768 = vmatpush1.bf16.msra.mxu0 %v1706
    %1769 = vmatprep.subr.bf16.mxu0 0
    %1770 = vmatpush1.bf16.msra.mxu0 %v1707
    %1771 = vmatprep.subr.bf16.mxu0 0
    %1772 = vmatpush1.bf16.msra.mxu0 %v1708
    %1773 = vmatprep.mubr.bf16.mxu0 %v1537
    %1774 = vmatmul.mubr.bf16.gmra.mrb[0].mxu0 %v1536
    %v1775 = vpop.f32.mrb[0].mxu0
    %v1776 = vadd.f32 %v1595, %v1775
    %v1777 = vpop.f32.mrb[0].mxu0
    %v1778 = vpop.f32.mrb[0].mxu0
    %v1779 = vadd.f32 %v1595, %v1778
    %v1780 = vpop.f32.mrb[0].mxu0
    %1781 = vmatprep.mubr.bf16.mxu0 %v1540
    %1782 = vmatmul.mubr.bf16.gmra.mrb[0].mxu0 %v1539
    %v1783 = vpop.f32.mrb[0].mxu0
    %v1784 = vadd.f32 %v1595, %v1783
    %v1785 = vpop.f32.mrb[0].mxu0
    %v1786 = vpop.f32.mrb[0].mxu0
    %v1787 = vadd.f32 %v1595, %v1786
    %v1788 = vpop.f32.mrb[0].mxu0
    %1789 = vdwg.mxu0
    %1790 = vmatprep.subr.bf16.mxu0 0
    %1791 = vmatpush1.bf16.msra.mxu0 %v1709
    %1792 = vmatprep.subr.bf16.mxu0 0
    %1793 = vmatpush1.bf16.msra.mxu0 %v1710
    %1794 = vmatprep.subr.bf16.mxu0 0
    %1795 = vmatpush1.bf16.msra.mxu0 %v1711
    %1796 = vmatprep.subr.bf16.mxu0 0
    %1797 = vmatpush1.bf16.msra.mxu0 %v1712
    %1798 = vmatprep.subr.bf16.mxu0 0
    %1799 = vmatpush1.bf16.msra.mxu0 %v1713
    %1800 = vmatprep.subr.bf16.mxu0 0
    %1801 = vmatpush1.bf16.msra.mxu0 %v1714
    %1802 = vmatprep.subr.bf16.mxu0 0
    %1803 = vmatpush1.bf16.msra.mxu0 %v1715
    %1804 = vmatprep.subr.bf16.mxu0 0
    %1805 = vmatpush1.bf16.msra.mxu0 %v1716
    %1806 = vmatprep.subr.bf16.mxu0 0
    %1807 = vmatpush1.bf16.msra.mxu0 0
    %1808 = vmatprep.subr.bf16.mxu0 0
    %1809 = vmatpush1.bf16.msra.mxu0 0
    %1810 = vmatprep.subr.bf16.mxu0 0
    %1811 = vmatpush1.bf16.msra.mxu0 0
    %1812 = vmatprep.subr.bf16.mxu0 0
    %1813 = vmatpush1.bf16.msra.mxu0 0
    %1814 = vmatprep.subr.bf16.mxu0 0
    %1815 = vmatpush1.bf16.msra.mxu0 0
    %1816 = vmatprep.subr.bf16.mxu0 0
    %1817 = vmatpush1.bf16.msra.mxu0 0
    %1818 = vmatprep.subr.bf16.mxu0 0
    %1819 = vmatpush1.bf16.msra.mxu0 0
    %1820 = vmatprep.subr.bf16.mxu0 0
    %1821 = vmatpush1.bf16.msra.mxu0 0
    %1822 = vmatprep.mubr.bf16.mxu0 0
    %1823 = vmatmul.mubr.bf16.gmra.mrb[0].mxu0 %v1538
    %v1824 = vpop.f32.mrb[0].mxu0
    %v1825 = vadd.f32 %v1776, %v1824
    %v1826 = vpop.f32.mrb[0].mxu0
    %v1827 = vpop.f32.mrb[0].mxu0
    %v1828 = vadd.f32 %v1779, %v1827
    %v1829 = vpop.f32.mrb[0].mxu0
    %1830 = vmatprep.mubr.bf16.mxu0 0
    %1831 = vmatmul.mubr.bf16.gmra.mrb[0].mxu0 %v1541
    %v1832 = vpop.f32.mrb[0].mxu0
    %v1833 = vadd.f32 %v1784, %v1832
    %v1834 = vpop.f32.mrb[0].mxu0
    %v1835 = vpop.f32.mrb[0].mxu0
    %v1836 = vadd.f32 %v1787, %v1835
    %v1837 = vpop.f32.mrb[0].mxu0
    %1838 = vdwg.mxu0
    %v1839 = vpack.c.bf16 %v1828, %v1825
    %v1840 = vpack.c.bf16 %v1836, %v1833
    %v1841 = vld [vmem:[#allocation7] sm:$0xf]
    %v1842 = vld [vmem:[#allocation7 + $0x4] sm:$0xf]
    %v1843 = vld [vmem:[#allocation7 + $0x8] sm:$0xf]
    %v1844 = vld [vmem:[#allocation7 + $0xc] sm:$0xf]
    %v1845 = vld [vmem:[#allocation7 + $0x10] sm:$0xf]
    %v1846 = vld [vmem:[#allocation7 + $0x14] sm:$0xf]
    %v1847 = vld [vmem:[#allocation7 + $0x18] sm:$0xf]
    %v1848 = vld [vmem:[#allocation7 + $0x1c] sm:$0xf]
    %v1849 = vld [vmem:[#allocation7 + $0x20] sm:$0xf]
    %v1850 = vld [vmem:[#allocation7 + $0x24] sm:$0xf]
    %v1851 = vld [vmem:[#allocation7 + $0x28] sm:$0xf]
    %v1852 = vld [vmem:[#allocation7 + $0x2c] sm:$0xf]
    %v1853 = vld [vmem:[#allocation7 + $0x30] sm:$0xf]
    %v1854 = vld [vmem:[#allocation7 + $0x34] sm:$0xf]
    %v1855 = vld [vmem:[#allocation7 + $0x38] sm:$0xf]
    %v1856 = vld [vmem:[#allocation7 + $0x3c] sm:$0xf]
    %v1857 = vld [vmem:[%s6] sm:$0x1]
    %v1859 = vlaneseq
    %v1860 = vshrl.u32 %v1859, 7
    %v1861 = vsub.s32 0, %v1860
    %v1862 = vrot.slane %v1857, %v1861
    %v1880 = vunpack.c.l.b16 %v1841
    %v1881 = vunpack.c.l.b16 %v1842
    %v1882 = vunpack.c.l.b16 %v1843
    %v1883 = vunpack.c.l.b16 %v1844
    %v1884 = vunpack.c.l.b16 %v1845
    %v1885 = vunpack.c.l.b16 %v1846
    %v1886 = vunpack.c.l.b16 %v1847
    %v1887 = vunpack.c.l.b16 %v1848
    %v1888 = vunpack.c.l.b16 %v1849
    %v1889 = vunpack.c.l.b16 %v1850
    %v1890 = vunpack.c.l.b16 %v1851
    %v1891 = vunpack.c.l.b16 %v1852
    %v1892 = vunpack.c.l.b16 %v1853
    %v1893 = vunpack.c.l.b16 %v1854
    %v1894 = vunpack.c.l.b16 %v1855
    %v1895 = vunpack.c.l.b16 %v1856
    %v1896 = vpack.c.b16 %v1881, %v1880
    %v1897 = vpack.c.b16 %v1883, %v1882
    %v1898 = vpack.c.b16 %v1885, %v1884
    %v1899 = vpack.c.b16 %v1887, %v1886
    %v1900 = vpack.c.b16 %v1889, %v1888
    %v1901 = vpack.c.b16 %v1891, %v1890
    %v1902 = vpack.c.b16 %v1893, %v1892
    %v1903 = vpack.c.b16 %v1895, %v1894
    %1912 = vmatprep.subr.bf16.mxu0 0
    %1913 = vmatpush1.bf16.msra.mxu0 %v1896
    %1914 = vmatprep.subr.bf16.mxu0 0
    %1915 = vmatpush1.bf16.msra.mxu0 %v1897
    %1916 = vmatprep.subr.bf16.mxu0 0
    %1917 = vmatpush1.bf16.msra.mxu0 %v1898
    %1918 = vmatprep.subr.bf16.mxu0 0
    %1919 = vmatpush1.bf16.msra.mxu0 %v1899
    %1920 = vmatprep.subr.bf16.mxu0 0
    %1921 = vmatpush1.bf16.msra.mxu0 %v1900
    %1922 = vmatprep.subr.bf16.mxu0 0
    %1923 = vmatpush1.bf16.msra.mxu0 %v1901
    %1924 = vmatprep.subr.bf16.mxu0 0
    %1925 = vmatpush1.bf16.msra.mxu0 %v1902
    %1926 = vmatprep.subr.bf16.mxu0 0
    %1927 = vmatpush1.bf16.msra.mxu0 %v1903
    %1928 = vmatprep.subr.bf16.mxu0 0
    %1929 = vmatpush1.bf16.msra.mxu0 0
    %1930 = vmatprep.subr.bf16.mxu0 0
    %1931 = vmatpush1.bf16.msra.mxu0 0
    %1932 = vmatprep.subr.bf16.mxu0 0
    %1933 = vmatpush1.bf16.msra.mxu0 0
    %1934 = vmatprep.subr.bf16.mxu0 0
    %1935 = vmatpush1.bf16.msra.mxu0 0
    %1936 = vmatprep.subr.bf16.mxu0 0
    %1937 = vmatpush1.bf16.msra.mxu0 0
    %1938 = vmatprep.subr.bf16.mxu0 0
    %1939 = vmatpush1.bf16.msra.mxu0 0
    %1940 = vmatprep.subr.bf16.mxu0 0
    %1941 = vmatpush1.bf16.msra.mxu0 0
    %1942 = vmatprep.subr.bf16.mxu0 0
    %1943 = vmatpush1.bf16.msra.mxu0 0
    %1944 = vmatprep.mubr.bf16.mxu0 0
    %1945 = vmatmul.mubr.bf16.gmra.mrb[0].mxu0 %v1839
    %v1946 = vpop.f32.mrb[0].mxu0
    %v1947 = vadd.f32 %v1862, %v1946
    %v1948 = vpop.f32.mrb[0].mxu0
    %v1949 = vpop.f32.mrb[0].mxu0
    %v1950 = vadd.f32 %v1862, %v1949
    %v1951 = vpop.f32.mrb[0].mxu0
    %1952 = vmatprep.mubr.bf16.mxu0 0
    %1953 = vmatmul.mubr.bf16.gmra.mrb[0].mxu0 %v1840
    %v1954 = vpop.f32.mrb[0].mxu0
    %v1955 = vadd.f32 %v1862, %v1954
    %v1956 = vpop.f32.mrb[0].mxu0
    %v1957 = vpop.f32.mrb[0].mxu0
    %v1958 = vadd.f32 %v1862, %v1957
    %v1959 = vpop.f32.mrb[0].mxu0
    %1960 = vdwg.mxu0
    %1961 = vst [vmem:[%s7] sm:$0xff] %v1947
    %1962 = vst [vmem:[%s7 + $0x8] sm:$0xff] %v1950
    %1963 = vst [vmem:[%s7 + $0x10] sm:$0xff] %v1955
    %1964 = vst [vmem:[%s7 + $0x18] sm:$0xff] %v1958
    // Predicated region
    $region46: #{simple_net_forward.1} parent=1 // pred_check
      _
    $region47: #{simple_net_forward.1} parent=1 // pred_check_branch
      %1966 = sbr.rel (0) target = $region49
    $region48: #{simple_net_forward.1} parent=1 // pred_region
      _
    $region49: #{simple_net_forward.1} parent=1 // pred_fallthru
      _
    // Predicated region
    $region50: #{simple_net_forward.1} parent=1 // pred_check
      _
    $region51: #{simple_net_forward.1} parent=1 // pred_check_branch
      %1968 = sbr.rel (0) target = $region53
    $region52: #{simple_net_forward.1} parent=1 // pred_region
      _
    $region53: #{simple_net_forward.1} parent=1 // pred_fallthru
      _
    %1969 = vsyncpa [#allocation3], 1
    %1970 = vsyncpa [#allocation5], 1
    %1971 = vsyncpa [#allocation8], 1

</llo_original>
